<compile_context>
chip_gen: v6e
topology: v6e:2x2x1
jax: 0.10.0
libtpu: 0.0.40
codegen_flags: <defaults>
</compile_context>

<pallas_src>
import jax
import jax.numpy as jnp
from jax.experimental import pallas as pl
from jax.experimental.pallas import tpu as pltpu

D_IN, D_H1, D_H2, D_OUT = 2 * 768, 128, 32, 2


def _mlp_kernel(x_ref, w1_ref, b1_ref, w2_ref, b2_ref, w3_ref, b3_ref, o_ref):
    # bf16 cast in-VMEM (hidden under the x HBM DMA); all matmuls accumulate
    # in f32 on the MXU, bias-add / ReLU in f32 on the VPU.
    x = x_ref[...].astype(jnp.bfloat16)
    h1 = jnp.dot(x, w1_ref[...], preferred_element_type=jnp.float32)
    h1 = jnp.maximum(h1 + b1_ref[...], 0.0)                      # relu(dense1)
    h2 = jnp.dot(h1.astype(jnp.bfloat16), w2_ref[...],
                 preferred_element_type=jnp.float32)
    h2 = h2 + b2_ref[...]                                        # dense2
    # drop3: Dropout(p=0.1) is identity at inference (model.eval()).
    # TODO(synk): training-mode dropout via pltpu.prng_seed / prng_random_bits.
    h2 = jnp.maximum(h2, 0.0)                                    # relu
    out = jnp.dot(h2.astype(jnp.bfloat16), w3_ref[...],
                  preferred_element_type=jnp.float32)
    o_ref[...] = (out + b3_ref[...]).astype(o_ref.dtype)         # dense3


def _round_up(n, m):
    return ((n + m - 1) // m) * m


def _choose_tb(batch):
    # Aim for >= 8 grid steps when the batch allows (keeps the double-buffered
    # pipeline busy and lets v7x shard steps across its two TensorCores),
    # tile rows a multiple of 128 (MXU M-fill, sublane aligned), capped at
    # 2048 so an f32 x tile (12 MiB) x 2 pipeline buffers = 24 MiB fits
    # v7x's 64 MiB VMEM with headroom (v5e/v6e have 128 MiB, no issue).
    tb = _round_up(pl.cdiv(max(batch, 1), 8), 128)
    return int(max(128, min(tb, 2048)))


def net_forward(x, params, *, tb=None):
    """x: (B, 1536) float32 or bfloat16; params: w1,b1,w2,b2,w3,b3 (w as (in,out))."""
    B = x.shape[0]
    if tb is None:
        tb = _choose_tb(B)
    tb = int(max(8, _round_up(tb, 8)))   # sublane-aligned batch tile

    # Weights are tiny (~0.4 MiB in bf16): cast once here, constant block index
    # keeps them resident in VMEM for every grid step.
    w1 = params["w1"].astype(jnp.bfloat16)
    w2 = params["w2"].astype(jnp.bfloat16)
    w3 = params["w3"].astype(jnp.bfloat16)
    b1 = params["b1"].reshape(1, D_H1).astype(jnp.float32)
    b2 = params["b2"].reshape(1, D_H2).astype(jnp.float32)
    b3 = params["b3"].reshape(1, D_OUT).astype(jnp.float32)

    resident = lambda shape: pl.BlockSpec(shape, lambda i: (0, 0))

    # Scoped-VMEM budget follows the streamed x tile (2 pipeline buffers) plus
    # headroom for resident weights / h1 temporaries; capped below v7x's
    # 64 MiB physical VMEM with ~25% margin.
    itemsize = jnp.dtype(x.dtype).itemsize
    vmem_limit = int(min(48 * 1024 * 1024,
                         2 * tb * D_IN * itemsize + 16 * 1024 * 1024))

    # No batch padding: a partial last tile (if B % tb != 0) is handled by the
    # Pallas pipeline -- out-of-bounds rows are garbage in, masked on writeback.
    out = pl.pallas_call(
        _mlp_kernel,
        out_shape=jax.ShapeDtypeStruct((B, D_OUT), jnp.float32),
        grid_spec=pltpu.PrefetchScalarGridSpec(
            num_scalar_prefetch=0,
            grid=(pl.cdiv(B, tb),),
            in_specs=[
                pl.BlockSpec((tb, D_IN), lambda i: (i, 0)),   # streamed x tile
                resident((D_IN, D_H1)), resident((1, D_H1)),
                resident((D_H1, D_H2)), resident((1, D_H2)),
                resident((D_H2, D_OUT)), resident((1, D_OUT)),
            ],
            out_specs=pl.BlockSpec((tb, D_OUT), lambda i: (i, 0)),
        ),
        compiler_params=pltpu.CompilerParams(
            dimension_semantics=("parallel",),   # batch steps -> both v7x TCs
            vmem_limit_bytes=vmem_limit,
        ),
    )(x, w1, b1, w2, b2, w3, b3)
    return out


def init_params(key):
    """Deterministic init mimicking nn.Linear default (uniform +/- 1/sqrt(fan_in)).

    Biases are torch-style (fan_out,); net_forward reshapes to (1, N) itself.
    """
    ks = jax.random.split(key, 6)

    def lin(kw, kb, fan_in, fan_out):
        bound = 1.0 / jnp.sqrt(jnp.float32(fan_in))
        w = jax.random.uniform(kw, (fan_in, fan_out), jnp.float32, -bound, bound)
        b = jax.random.uniform(kb, (fan_out,), jnp.float32, -bound, bound)
        return w, b

    w1, b1 = lin(ks[0], ks[1], D_IN, D_H1)
    w2, b2 = lin(ks[2], ks[3], D_H1, D_H2)
    w3, b3 = lin(ks[4], ks[5], D_H2, D_OUT)
    return {"w1": w1, "b1": b1, "w2": w2, "b2": b2, "w3": w3, "b3": b3}


def _reference_bf16(x, p):
    # Mirrors the kernel's precision: bf16 operands, f32 accumulation.
    c = lambda a: a.astype(jnp.bfloat16).astype(jnp.float32)
    h = jnp.maximum(c(x) @ c(p["w1"]) + p["b1"], 0.0)
    h = c(h) @ c(p["w2"]) + p["b2"]
    h = jnp.maximum(h, 0.0)
    return c(h) @ c(p["w3"]) + p["b3"]


def _reference_f32(x, p):
    # Pure-f32 semantics of the PyTorch Net (eval mode: dropout = identity).
    h = jnp.maximum(x @ p["w1"] + p["b1"], 0.0)
    h = h @ p["w2"] + p["b2"]
    h = jnp.maximum(h, 0.0)
    return h @ p["w3"] + p["b3"]


if __name__ == "__main__":
    key = jax.random.PRNGKey(0)
    k_x, k_p = jax.random.split(key)
    B = 8
    x = jax.random.normal(k_x, (B, D_IN), jnp.float32)
    params = init_params(k_p)

    out = jax.block_until_ready(net_forward(x, params))
    assert out.shape == (B, D_OUT), out.shape

    # Tight check vs a reference mirroring the kernel's bf16-operand precision.
    ref = _reference_bf16(x, params)
    err = float(jnp.max(jnp.abs(out - ref)))
    assert jnp.allclose(out, ref, atol=2e-2, rtol=2e-2), (
        "mismatch vs bf16-precision reference, max abs err = %f" % err)

    # Looser sanity check vs the exact f32 PyTorch semantics (the kernel's only
    # deviation is bf16 operand rounding on the MXU; dropout is eval-mode id).
    ref32 = _reference_f32(x, params)
    err32 = float(jnp.max(jnp.abs(out - ref32)))
    assert jnp.allclose(out, ref32, atol=6e-2, rtol=6e-2), (
        "mismatch vs f32 reference, max abs err = %f" % err32)

    print("KERNEL_OK")
</pallas_src>

<mosaic_0001>
module attributes {stable_mosaic.version = 11 : i64} {
  func.func @_mlp_kernel(%arg0: i32, %arg1: memref<128x1536xf32, #tpu.memory_space<vmem>>, %arg2: memref<1536x128xbf16, #tpu.memory_space<vmem>>, %arg3: memref<1x128xf32, #tpu.memory_space<vmem>>, %arg4: memref<128x32xbf16, #tpu.memory_space<vmem>>, %arg5: memref<1x32xf32, #tpu.memory_space<vmem>>, %arg6: memref<32x2xbf16, #tpu.memory_space<vmem>>, %arg7: memref<1x2xf32, #tpu.memory_space<vmem>>, %arg8: memref<128x2xf32, #tpu.memory_space<vmem>>) attributes {dimension_semantics = [#tpu.dimension_semantics<parallel>], iteration_bounds = array<i64: 1>, scalar_prefetch = 0 : i64, scratch_operands = 0 : i64, tpu.core_type = #tpu.core_type<tc>, window_params = [{transform_indices = @transform_0, window_bounds = array<i64: 128, 1536>}, {pipeline_mode = #tpu.pipeline_mode<synchronous>, transform_indices = @transform_1, window_bounds = array<i64: 1536, 128>}, {pipeline_mode = #tpu.pipeline_mode<synchronous>, transform_indices = @transform_2, window_bounds = array<i64: 1, 128>}, {pipeline_mode = #tpu.pipeline_mode<synchronous>, transform_indices = @transform_3, window_bounds = array<i64: 128, 32>}, {pipeline_mode = #tpu.pipeline_mode<synchronous>, transform_indices = @transform_4, window_bounds = array<i64: 1, 32>}, {pipeline_mode = #tpu.pipeline_mode<synchronous>, transform_indices = @transform_5, window_bounds = array<i64: 32, 2>}, {pipeline_mode = #tpu.pipeline_mode<synchronous>, transform_indices = @transform_6, window_bounds = array<i64: 1, 2>}, {transform_indices = @transform_7, window_bounds = array<i64: 128, 2>}]} {
    %c0 = arith.constant 0 : index
    %c0_0 = arith.constant 0 : index
    %0 = vector.load %arg1[%c0, %c0_0] : memref<128x1536xf32, #tpu.memory_space<vmem>>, vector<128x1536xf32>
    %1 = arith.truncf %0 : vector<128x1536xf32> to vector<128x1536xbf16>
    %c0_1 = arith.constant 0 : index
    %c0_2 = arith.constant 0 : index
    %2 = vector.load %arg2[%c0_1, %c0_2] : memref<1536x128xbf16, #tpu.memory_space<vmem>>, vector<1536x128xbf16>
    %cst = arith.constant dense<0.000000e+00> : vector<128x128xf32>
    %3 = tpu.matmul %1, %2, %cst {dimension_numbers = #tpu.dot_dimension_numbers<[1], [0], [0], [1], [0, 0, 1, 1], [], []>} : vector<128x1536xbf16>, vector<1536x128xbf16>, vector<128x128xf32> -> vector<128x128xf32>
    %c0_3 = arith.constant 0 : index
    %c0_4 = arith.constant 0 : index
    %4 = vector.load %arg3[%c0_3, %c0_4] : memref<1x128xf32, #tpu.memory_space<vmem>>, vector<1x128xf32>
    %5 = vector.broadcast %4 : vector<1x128xf32> to vector<128x128xf32>
    %6 = arith.addf %3, %5 : vector<128x128xf32>
    %cst_5 = arith.constant 0.000000e+00 : f32
    %7 = vector.broadcast %cst_5 : f32 to vector<128x128xf32>
    %8 = arith.maximumf %6, %7 : vector<128x128xf32>
    %9 = arith.truncf %8 : vector<128x128xf32> to vector<128x128xbf16>
    %c0_6 = arith.constant 0 : index
    %c0_7 = arith.constant 0 : index
    %10 = vector.load %arg4[%c0_6, %c0_7] : memref<128x32xbf16, #tpu.memory_space<vmem>>, vector<128x32xbf16>
    %cst_8 = arith.constant dense<0.000000e+00> : vector<128x32xf32>
    %11 = tpu.matmul %9, %10, %cst_8 {dimension_numbers = #tpu.dot_dimension_numbers<[1], [0], [0], [1], [0, 0, 1, 1], [], []>} : vector<128x128xbf16>, vector<128x32xbf16>, vector<128x32xf32> -> vector<128x32xf32>
    %c0_9 = arith.constant 0 : index
    %c0_10 = arith.constant 0 : index
    %12 = vector.load %arg5[%c0_9, %c0_10] : memref<1x32xf32, #tpu.memory_space<vmem>>, vector<1x32xf32>
    %13 = vector.broadcast %12 : vector<1x32xf32> to vector<128x32xf32>
    %14 = arith.addf %11, %13 : vector<128x32xf32>
    %cst_11 = arith.constant 0.000000e+00 : f32
    %15 = vector.broadcast %cst_11 : f32 to vector<128x32xf32>
    %16 = arith.maximumf %14, %15 : vector<128x32xf32>
    %17 = arith.truncf %16 : vector<128x32xf32> to vector<128x32xbf16>
    %c0_12 = arith.constant 0 : index
    %c0_13 = arith.constant 0 : index
    %18 = vector.load %arg6[%c0_12, %c0_13] : memref<32x2xbf16, #tpu.memory_space<vmem>>, vector<32x2xbf16>
    %cst_14 = arith.constant dense<0.000000e+00> : vector<128x2xf32>
    %19 = tpu.matmul %17, %18, %cst_14 {dimension_numbers = #tpu.dot_dimension_numbers<[1], [0], [0], [1], [0, 0, 1, 1], [], []>} : vector<128x32xbf16>, vector<32x2xbf16>, vector<128x2xf32> -> vector<128x2xf32>
    %c0_15 = arith.constant 0 : index
    %c0_16 = arith.constant 0 : index
    %20 = vector.load %arg7[%c0_15, %c0_16] : memref<1x2xf32, #tpu.memory_space<vmem>>, vector<1x2xf32>
    %21 = vector.broadcast %20 : vector<1x2xf32> to vector<128x2xf32>
    %22 = arith.addf %19, %21 : vector<128x2xf32>
    %c0_17 = arith.constant 0 : index
    %c0_18 = arith.constant 0 : index
    %23 = vector.load %arg8[%c0_17, %c0_18] : memref<128x2xf32, #tpu.memory_space<vmem>>, vector<128x2xf32>
    tpu.vector_store %arg8[%c0_17, %c0_18], %22 {strides = array<i32>} : memref<128x2xf32, #tpu.memory_space<vmem>>, vector<128x2xf32>,
    return
  }
  func.func @transform_0(%arg0: i32) -> (i32, i32) {
    %c0_i32 = arith.constant 0 : i32
    %c0_i32_0 = arith.constant 0 : i32
    return %arg0, %c0_i32 : i32, i32
  }
  func.func @transform_1(%arg0: i32) -> (i32, i32) {
    %c0_i32 = arith.constant 0 : i32
    %c0_i32_0 = arith.constant 0 : i32
    %c0_i32_1 = arith.constant 0 : i32
    return %c0_i32, %c0_i32_0 : i32, i32
  }
  func.func @transform_2(%arg0: i32) -> (i32, i32) {
    %c0_i32 = arith.constant 0 : i32
    %c0_i32_0 = arith.constant 0 : i32
    %c0_i32_1 = arith.constant 0 : i32
    return %c0_i32, %c0_i32_0 : i32, i32
  }
  func.func @transform_3(%arg0: i32) -> (i32, i32) {
    %c0_i32 = arith.constant 0 : i32
    %c0_i32_0 = arith.constant 0 : i32
    %c0_i32_1 = arith.constant 0 : i32
    return %c0_i32, %c0_i32_0 : i32, i32
  }
  func.func @transform_4(%arg0: i32) -> (i32, i32) {
    %c0_i32 = arith.constant 0 : i32
    %c0_i32_0 = arith.constant 0 : i32
    %c0_i32_1 = arith.constant 0 : i32
    return %c0_i32, %c0_i32_0 : i32, i32
  }
  func.func @transform_5(%arg0: i32) -> (i32, i32) {
    %c0_i32 = arith.constant 0 : i32
    %c0_i32_0 = arith.constant 0 : i32
    %c0_i32_1 = arith.constant 0 : i32
    return %c0_i32, %c0_i32_0 : i32, i32
  }
  func.func @transform_6(%arg0: i32) -> (i32, i32) {
    %c0_i32 = arith.constant 0 : i32
    %c0_i32_0 = arith.constant 0 : i32
    %c0_i32_1 = arith.constant 0 : i32
    return %c0_i32, %c0_i32_0 : i32, i32
  }
  func.func @transform_7(%arg0: i32) -> (i32, i32) {
    %c0_i32 = arith.constant 0 : i32
    %c0_i32_0 = arith.constant 0 : i32
    return %arg0, %c0_i32 : i32, i32
  }
}

</mosaic_0001>

<llo_original>
// kernel: tpu_custom_call.1
$region0: #{tpu_custom_call.1}
  #allocation0 [shape = 'u32[]', space=smem, size = 0x4, offset = 0x4, fixed_abs, tag = 'smem constant byte address 0x4 - core index']
  #allocation1 [shape = 'u32[144,128]{1,0:T(1,128)}', space=vmem, size = 0x12000, scoped, tag = 'internal scratch']
  %s0 = inlined_call_operand.vmem [shape: f32[8,1536], index: 0, kind: input, shape index: {}]
  %s1 = inlined_call_operand.hbm [shape: bf16[1536,128], index: 1, kind: input, shape index: {}]
  %s2 = inlined_call_operand.vmem [shape: f32[1,128], index: 2, kind: input, shape index: {}]
  %s3 = inlined_call_operand.vmem [shape: bf16[128,32], index: 3, kind: input, shape index: {}]
  %s4 = inlined_call_operand.vmem [shape: f32[1,32], index: 4, kind: input, shape index: {}]
  %s5 = inlined_call_operand.vmem [shape: bf16[32,2], index: 5, kind: input, shape index: {}]
  %s6 = inlined_call_operand.vmem [shape: f32[1,2], index: 6, kind: input, shape index: {}]
  %s7 = inlined_call_operand.vmem [shape: f32[8,2], index: 7, kind: output, shape index: {}]
  %s8 = sld [smem:[#allocation0]]
  $region76: #{tpu_custom_call.1} parent=0
    _
  %s10 = ssub.s32 1, %s8
  %s11 = scalar_select 0, %s10, %s8
  $region1: #{tpu_custom_call.1} parent=0
    #allocation2 [shape = 'u8[393216]{0}', space=vmem, size = 0x60000, scoped, tag = 'input window, operand 1, single buffered']
    #allocation3 [shape = 's32[1]{0}', space=sflag, size = 0x4, scoped, tag = 'scoped memory for tpu_custom_call.1']
    #allocation4 [shape = 'u8[65536]{0}', space=vmem, size = 0x10000, scoped, tag = 'output window, operand 0, single buffered']
    %12 = vsyncpa [#allocation3], 0
    // Predicated region
    $region2: #{tpu_custom_call.1} parent=1 // pred_check
      _
    $region3: #{tpu_custom_call.1} parent=1 // pred_check_branch
      %14 = sbr.rel (0) target = $region5
    $region4: #{tpu_custom_call.1} parent=1 // pred_region
      _
    $region5: #{tpu_custom_call.1} parent=1 // pred_fallthru
      _
    // Predicated region
    $region6: #{tpu_custom_call.1} parent=1 // pred_check
      _
    $region7: #{tpu_custom_call.1} parent=1 // pred_check_branch
      %16 = sbr.rel (0) target = $region9
    $region8: #{tpu_custom_call.1} parent=1 // pred_region
      %s18 = ssub.s32 12288, 12288
      %19 = vsyncadd [#allocation3], %s18
      %s20 = sshll.u32 [#allocation2], 4
      %s21 = int_to_ptr.vmem [resolvable:$true] %s20
      %26 = dma.hbm_to_vmem [thread:$0]  %s1, 12288, %s21, [#allocation3], 64, 64, 4
    $region9: #{tpu_custom_call.1} parent=1 // pred_fallthru
      _
    // Predicated region
    $region10: #{tpu_custom_call.1} parent=1 // pred_check
      _
    $region11: #{tpu_custom_call.1} parent=1 // pred_check_branch
      %28 = sbr.rel (0) target = $region13
    $region12: #{tpu_custom_call.1} parent=1 // pred_region
      _
    $region13: #{tpu_custom_call.1} parent=1 // pred_fallthru
      _
    // Predicated region
    $region14: #{tpu_custom_call.1} parent=1 // pred_check
      _
    $region15: #{tpu_custom_call.1} parent=1 // pred_check_branch
      %30 = sbr.rel (0) target = $region17
    $region16: #{tpu_custom_call.1} parent=1 // pred_region
      _
    $region17: #{tpu_custom_call.1} parent=1 // pred_fallthru
      _
    // Predicated region
    $region18: #{tpu_custom_call.1} parent=1 // pred_check
      _
    $region19: #{tpu_custom_call.1} parent=1 // pred_check_branch
      %32 = sbr.rel (0) target = $region21
    $region20: #{tpu_custom_call.1} parent=1 // pred_region
      _
    $region21: #{tpu_custom_call.1} parent=1 // pred_fallthru
      _
    // Predicated region
    $region22: #{tpu_custom_call.1} parent=1 // pred_check
      _
    $region23: #{tpu_custom_call.1} parent=1 // pred_check_branch
      %34 = sbr.rel (0) target = $region25
    $region24: #{tpu_custom_call.1} parent=1 // pred_region
      _
    $region25: #{tpu_custom_call.1} parent=1 // pred_fallthru
      _
    // Predicated region
    $region26: #{tpu_custom_call.1} parent=1 // pred_check
      _
    $region27: #{tpu_custom_call.1} parent=1 // pred_check_branch
      %36 = sbr.rel (0) target = $region29
    $region28: #{tpu_custom_call.1} parent=1 // pred_region
      _
    $region29: #{tpu_custom_call.1} parent=1 // pred_fallthru
      _
    // Predicated region
    $region30: #{tpu_custom_call.1} parent=1 // pred_check
      _
    $region31: #{tpu_custom_call.1} parent=1 // pred_check_branch
      %38 = sbr.rel (0) target = $region33
    $region32: #{tpu_custom_call.1} parent=1 // pred_region
      %39 = dma.done [#allocation3], 12288
    $region33: #{tpu_custom_call.1} parent=1 // pred_fallthru
      _
    %v41 = vld [vmem:[%s0] sm:$0xff]
    %v42 = vld [vmem:[%s0 + $0x8] sm:$0xff]
    %v43 = vld [vmem:[%s0 + $0x10] sm:$0xff]
    %v44 = vld [vmem:[%s0 + $0x18] sm:$0xff]
    %v45 = vld [vmem:[%s0 + $0x20] sm:$0xff]
    %v46 = vld [vmem:[%s0 + $0x28] sm:$0xff]
    %v47 = vld [vmem:[%s0 + $0x30] sm:$0xff]
    %v48 = vld [vmem:[%s0 + $0x38] sm:$0xff]
    %v49 = vld [vmem:[%s0 + $0x40] sm:$0xff]
    %v50 = vld [vmem:[%s0 + $0x48] sm:$0xff]
    %v51 = vld [vmem:[%s0 + $0x50] sm:$0xff]
    %v52 = vld [vmem:[%s0 + $0x58] sm:$0xff]
    %v53 = vld [vmem:[%s0 + $0x60] sm:$0xff]
    %v54 = vld [vmem:[%s0 + $0x68] sm:$0xff]
    %v55 = vld [vmem:[%s0 + $0x70] sm:$0xff]
    %v56 = vld [vmem:[%s0 + $0x78] sm:$0xff]
    %v57 = vld [vmem:[%s0 + $0x80] sm:$0xff]
    %v58 = vld [vmem:[%s0 + $0x88] sm:$0xff]
    %v59 = vld [vmem:[%s0 + $0x90] sm:$0xff]
    %v60 = vld [vmem:[%s0 + $0x98] sm:$0xff]
    %v61 = vld [vmem:[%s0 + $0xa0] sm:$0xff]
    %v62 = vld [vmem:[%s0 + $0xa8] sm:$0xff]
    %v63 = vld [vmem:[%s0 + $0xb0] sm:$0xff]
    %v64 = vld [vmem:[%s0 + $0xb8] sm:$0xff]
    %v65 = vld [vmem:[%s0 + $0xc0] sm:$0xff]
    %v66 = vld [vmem:[%s0 + $0xc8] sm:$0xff]
    %v67 = vld [vmem:[%s0 + $0xd0] sm:$0xff]
    %v68 = vld [vmem:[%s0 + $0xd8] sm:$0xff]
    %v69 = vld [vmem:[%s0 + $0xe0] sm:$0xff]
    %v70 = vld [vmem:[%s0 + $0xe8] sm:$0xff]
    %v71 = vld [vmem:[%s0 + $0xf0] sm:$0xff]
    %v72 = vld [vmem:[%s0 + $0xf8] sm:$0xff]
    %v73 = vld [vmem:[%s0 + $0x100] sm:$0xff]
    %v74 = vld [vmem:[%s0 + $0x108] sm:$0xff]
    %v75 = vld [vmem:[%s0 + $0x110] sm:$0xff]
    %v76 = vld [vmem:[%s0 + $0x118] sm:$0xff]
    %v77 = vld [vmem:[%s0 + $0x120] sm:$0xff]
    %v78 = vld [vmem:[%s0 + $0x128] sm:$0xff]
    %v79 = vld [vmem:[%s0 + $0x130] sm:$0xff]
    %v80 = vld [vmem:[%s0 + $0x138] sm:$0xff]
    %v81 = vld [vmem:[%s0 + $0x140] sm:$0xff]
    %v82 = vld [vmem:[%s0 + $0x148] sm:$0xff]
    %v83 = vld [vmem:[%s0 + $0x150] sm:$0xff]
    %v84 = vld [vmem:[%s0 + $0x158] sm:$0xff]
    %v85 = vld [vmem:[%s0 + $0x160] sm:$0xff]
    %v86 = vld [vmem:[%s0 + $0x168] sm:$0xff]
    %v87 = vld [vmem:[%s0 + $0x170] sm:$0xff]
    %v88 = vld [vmem:[%s0 + $0x178] sm:$0xff]
    %v89 = vld [vmem:[%s0 + $0x180] sm:$0xff]
    %v90 = vld [vmem:[%s0 + $0x188] sm:$0xff]
    %v91 = vld [vmem:[%s0 + $0x190] sm:$0xff]
    %v92 = vld [vmem:[%s0 + $0x198] sm:$0xff]
    %v93 = vld [vmem:[%s0 + $0x1a0] sm:$0xff]
    %v94 = vld [vmem:[%s0 + $0x1a8] sm:$0xff]
    %v95 = vld [vmem:[%s0 + $0x1b0] sm:$0xff]
    %v96 = vld [vmem:[%s0 + $0x1b8] sm:$0xff]
    %v97 = vld [vmem:[%s0 + $0x1c0] sm:$0xff]
    %v98 = vld [vmem:[%s0 + $0x1c8] sm:$0xff]
    %v99 = vld [vmem:[%s0 + $0x1d0] sm:$0xff]
    %v100 = vld [vmem:[%s0 + $0x1d8] sm:$0xff]
    %v101 = vld [vmem:[%s0 + $0x1e0] sm:$0xff]
    %v102 = vld [vmem:[%s0 + $0x1e8] sm:$0xff]
    %v103 = vld [vmem:[%s0 + $0x1f0] sm:$0xff]
    %v104 = vld [vmem:[%s0 + $0x1f8] sm:$0xff]
    %v105 = vld [vmem:[%s0 + $0x200] sm:$0xff]
    %v106 = vld [vmem:[%s0 + $0x208] sm:$0xff]
    %v107 = vld [vmem:[%s0 + $0x210] sm:$0xff]
    %v108 = vld [vmem:[%s0 + $0x218] sm:$0xff]
    %v109 = vld [vmem:[%s0 + $0x220] sm:$0xff]
    %v110 = vld [vmem:[%s0 + $0x228] sm:$0xff]
    %v111 = vld [vmem:[%s0 + $0x230] sm:$0xff]
    %v112 = vld [vmem:[%s0 + $0x238] sm:$0xff]
    %v113 = vld [vmem:[%s0 + $0x240] sm:$0xff]
    %v114 = vld [vmem:[%s0 + $0x248] sm:$0xff]
    %v115 = vld [vmem:[%s0 + $0x250] sm:$0xff]
    %v116 = vld [vmem:[%s0 + $0x258] sm:$0xff]
    %v117 = vld [vmem:[%s0 + $0x260] sm:$0xff]
    %v118 = vld [vmem:[%s0 + $0x268] sm:$0xff]
    %v119 = vld [vmem:[%s0 + $0x270] sm:$0xff]
    %v120 = vld [vmem:[%s0 + $0x278] sm:$0xff]
    %v121 = vld [vmem:[%s0 + $0x280] sm:$0xff]
    %v122 = vld [vmem:[%s0 + $0x288] sm:$0xff]
    %v123 = vld [vmem:[%s0 + $0x290] sm:$0xff]
    %v124 = vld [vmem:[%s0 + $0x298] sm:$0xff]
    %v125 = vld [vmem:[%s0 + $0x2a0] sm:$0xff]
    %v126 = vld [vmem:[%s0 + $0x2a8] sm:$0xff]
    %v127 = vld [vmem:[%s0 + $0x2b0] sm:$0xff]
    %v128 = vld [vmem:[%s0 + $0x2b8] sm:$0xff]
    %v129 = vld [vmem:[%s0 + $0x2c0] sm:$0xff]
    %v130 = vld [vmem:[%s0 + $0x2c8] sm:$0xff]
    %v131 = vld [vmem:[%s0 + $0x2d0] sm:$0xff]
    %v132 = vld [vmem:[%s0 + $0x2d8] sm:$0xff]
    %v133 = vld [vmem:[%s0 + $0x2e0] sm:$0xff]
    %v134 = vld [vmem:[%s0 + $0x2e8] sm:$0xff]
    %v135 = vld [vmem:[%s0 + $0x2f0] sm:$0xff]
    %v136 = vld [vmem:[%s0 + $0x2f8] sm:$0xff]
    %v137 = vld [vmem:[%s0 + $0x300] sm:$0xff]
    %v138 = vld [vmem:[%s0 + $0x308] sm:$0xff]
    %v139 = vld [vmem:[%s0 + $0x310] sm:$0xff]
    %v140 = vld [vmem:[%s0 + $0x318] sm:$0xff]
    %v141 = vld [vmem:[%s0 + $0x320] sm:$0xff]
    %v142 = vld [vmem:[%s0 + $0x328] sm:$0xff]
    %v143 = vld [vmem:[%s0 + $0x330] sm:$0xff]
    %v144 = vld [vmem:[%s0 + $0x338] sm:$0xff]
    %v145 = vld [vmem:[%s0 + $0x340] sm:$0xff]
    %v146 = vld [vmem:[%s0 + $0x348] sm:$0xff]
    %v147 = vld [vmem:[%s0 + $0x350] sm:$0xff]
    %v148 = vld [vmem:[%s0 + $0x358] sm:$0xff]
    %v149 = vld [vmem:[%s0 + $0x360] sm:$0xff]
    %v150 = vld [vmem:[%s0 + $0x368] sm:$0xff]
    %v151 = vld [vmem:[%s0 + $0x370] sm:$0xff]
    %v152 = vld [vmem:[%s0 + $0x378] sm:$0xff]
    %v153 = vld [vmem:[%s0 + $0x380] sm:$0xff]
    %v154 = vld [vmem:[%s0 + $0x388] sm:$0xff]
    %v155 = vld [vmem:[%s0 + $0x390] sm:$0xff]
    %v156 = vld [vmem:[%s0 + $0x398] sm:$0xff]
    %v157 = vld [vmem:[%s0 + $0x3a0] sm:$0xff]
    %v158 = vld [vmem:[%s0 + $0x3a8] sm:$0xff]
    %v159 = vld [vmem:[%s0 + $0x3b0] sm:$0xff]
    %v160 = vld [vmem:[%s0 + $0x3b8] sm:$0xff]
    %v161 = vld [vmem:[%s0 + $0x3c0] sm:$0xff]
    %v162 = vld [vmem:[%s0 + $0x3c8] sm:$0xff]
    %v163 = vld [vmem:[%s0 + $0x3d0] sm:$0xff]
    %v164 = vld [vmem:[%s0 + $0x3d8] sm:$0xff]
    %v165 = vld [vmem:[%s0 + $0x3e0] sm:$0xff]
    %v166 = vld [vmem:[%s0 + $0x3e8] sm:$0xff]
    %v167 = vld [vmem:[%s0 + $0x3f0] sm:$0xff]
    %v168 = vld [vmem:[%s0 + $0x3f8] sm:$0xff]
    %v169 = vld [vmem:[%s0 + $0x400] sm:$0xff]
    %v170 = vld [vmem:[%s0 + $0x408] sm:$0xff]
    %v171 = vld [vmem:[%s0 + $0x410] sm:$0xff]
    %v172 = vld [vmem:[%s0 + $0x418] sm:$0xff]
    %v173 = vld [vmem:[%s0 + $0x420] sm:$0xff]
    %v174 = vld [vmem:[%s0 + $0x428] sm:$0xff]
    %v175 = vld [vmem:[%s0 + $0x430] sm:$0xff]
    %v176 = vld [vmem:[%s0 + $0x438] sm:$0xff]
    %v177 = vld [vmem:[%s0 + $0x440] sm:$0xff]
    %v178 = vld [vmem:[%s0 + $0x448] sm:$0xff]
    %v179 = vld [vmem:[%s0 + $0x450] sm:$0xff]
    %v180 = vld [vmem:[%s0 + $0x458] sm:$0xff]
    %v181 = vld [vmem:[%s0 + $0x460] sm:$0xff]
    %v182 = vld [vmem:[%s0 + $0x468] sm:$0xff]
    %v183 = vld [vmem:[%s0 + $0x470] sm:$0xff]
    %v184 = vld [vmem:[%s0 + $0x478] sm:$0xff]
    %v185 = vld [vmem:[%s0 + $0x480] sm:$0xff]
    %v186 = vld [vmem:[%s0 + $0x488] sm:$0xff]
    %v187 = vld [vmem:[%s0 + $0x490] sm:$0xff]
    %v188 = vld [vmem:[%s0 + $0x498] sm:$0xff]
    %v189 = vld [vmem:[%s0 + $0x4a0] sm:$0xff]
    %v190 = vld [vmem:[%s0 + $0x4a8] sm:$0xff]
    %v191 = vld [vmem:[%s0 + $0x4b0] sm:$0xff]
    %v192 = vld [vmem:[%s0 + $0x4b8] sm:$0xff]
    %v193 = vld [vmem:[%s0 + $0x4c0] sm:$0xff]
    %v194 = vld [vmem:[%s0 + $0x4c8] sm:$0xff]
    %v195 = vld [vmem:[%s0 + $0x4d0] sm:$0xff]
    %v196 = vld [vmem:[%s0 + $0x4d8] sm:$0xff]
    %v197 = vld [vmem:[%s0 + $0x4e0] sm:$0xff]
    %v198 = vld [vmem:[%s0 + $0x4e8] sm:$0xff]
    %v199 = vld [vmem:[%s0 + $0x4f0] sm:$0xff]
    %v200 = vld [vmem:[%s0 + $0x4f8] sm:$0xff]
    %v201 = vld [vmem:[%s0 + $0x500] sm:$0xff]
    %v202 = vld [vmem:[%s0 + $0x508] sm:$0xff]
    %v203 = vld [vmem:[%s0 + $0x510] sm:$0xff]
    %v204 = vld [vmem:[%s0 + $0x518] sm:$0xff]
    %v205 = vld [vmem:[%s0 + $0x520] sm:$0xff]
    %v206 = vld [vmem:[%s0 + $0x528] sm:$0xff]
    %v207 = vld [vmem:[%s0 + $0x530] sm:$0xff]
    %v208 = vld [vmem:[%s0 + $0x538] sm:$0xff]
    %v209 = vld [vmem:[%s0 + $0x540] sm:$0xff]
    %v210 = vld [vmem:[%s0 + $0x548] sm:$0xff]
    %v211 = vld [vmem:[%s0 + $0x550] sm:$0xff]
    %v212 = vld [vmem:[%s0 + $0x558] sm:$0xff]
    %v213 = vld [vmem:[%s0 + $0x560] sm:$0xff]
    %v214 = vld [vmem:[%s0 + $0x568] sm:$0xff]
    %v215 = vld [vmem:[%s0 + $0x570] sm:$0xff]
    %v216 = vld [vmem:[%s0 + $0x578] sm:$0xff]
    %v217 = vld [vmem:[%s0 + $0x580] sm:$0xff]
    %v218 = vld [vmem:[%s0 + $0x588] sm:$0xff]
    %v219 = vld [vmem:[%s0 + $0x590] sm:$0xff]
    %v220 = vld [vmem:[%s0 + $0x598] sm:$0xff]
    %v221 = vld [vmem:[%s0 + $0x5a0] sm:$0xff]
    %v222 = vld [vmem:[%s0 + $0x5a8] sm:$0xff]
    %v223 = vld [vmem:[%s0 + $0x5b0] sm:$0xff]
    %v224 = vld [vmem:[%s0 + $0x5b8] sm:$0xff]
    %v225 = vld [vmem:[%s0 + $0x5c0] sm:$0xff]
    %v226 = vld [vmem:[%s0 + $0x5c8] sm:$0xff]
    %v227 = vld [vmem:[%s0 + $0x5d0] sm:$0xff]
    %v228 = vld [vmem:[%s0 + $0x5d8] sm:$0xff]
    %v229 = vld [vmem:[%s0 + $0x5e0] sm:$0xff]
    %v230 = vld [vmem:[%s0 + $0x5e8] sm:$0xff]
    %v231 = vld [vmem:[%s0 + $0x5f0] sm:$0xff]
    %v232 = vld [vmem:[%s0 + $0x5f8] sm:$0xff]
    %v233 = vpack.c.bf16 %v53, %v41
    %v234 = vpack.c.bf16 %v54, %v42
    %v235 = vpack.c.bf16 %v55, %v43
    %v236 = vpack.c.bf16 %v56, %v44
    %v237 = vpack.c.bf16 %v57, %v45
    %v238 = vpack.c.bf16 %v58, %v46
    %v239 = vpack.c.bf16 %v59, %v47
    %v240 = vpack.c.bf16 %v60, %v48
    %v241 = vpack.c.bf16 %v61, %v49
    %v242 = vpack.c.bf16 %v62, %v50
    %v243 = vpack.c.bf16 %v63, %v51
    %v244 = vpack.c.bf16 %v64, %v52
    %v245 = vpack.c.bf16 %v77, %v65
    %v246 = vpack.c.bf16 %v78, %v66
    %v247 = vpack.c.bf16 %v79, %v67
    %v248 = vpack.c.bf16 %v80, %v68
    %v249 = vpack.c.bf16 %v81, %v69
    %v250 = vpack.c.bf16 %v82, %v70
    %v251 = vpack.c.bf16 %v83, %v71
    %v252 = vpack.c.bf16 %v84, %v72
    %v253 = vpack.c.bf16 %v85, %v73
    %v254 = vpack.c.bf16 %v86, %v74
    %v255 = vpack.c.bf16 %v87, %v75
    %v256 = vpack.c.bf16 %v88, %v76
    %v257 = vpack.c.bf16 %v101, %v89
    %v258 = vpack.c.bf16 %v102, %v90
    %v259 = vpack.c.bf16 %v103, %v91
    %v260 = vpack.c.bf16 %v104, %v92
    %v261 = vpack.c.bf16 %v105, %v93
    %v262 = vpack.c.bf16 %v106, %v94
    %v263 = vpack.c.bf16 %v107, %v95
    %v264 = vpack.c.bf16 %v108, %v96
    %v265 = vpack.c.bf16 %v109, %v97
    %v266 = vpack.c.bf16 %v110, %v98
    %v267 = vpack.c.bf16 %v111, %v99
    %v268 = vpack.c.bf16 %v112, %v100
    %v269 = vpack.c.bf16 %v125, %v113
    %v270 = vpack.c.bf16 %v126, %v114
    %v271 = vpack.c.bf16 %v127, %v115
    %v272 = vpack.c.bf16 %v128, %v116
    %v273 = vpack.c.bf16 %v129, %v117
    %v274 = vpack.c.bf16 %v130, %v118
    %v275 = vpack.c.bf16 %v131, %v119
    %v276 = vpack.c.bf16 %v132, %v120
    %v277 = vpack.c.bf16 %v133, %v121
    %v278 = vpack.c.bf16 %v134, %v122
    %v279 = vpack.c.bf16 %v135, %v123
    %v280 = vpack.c.bf16 %v136, %v124
    %v281 = vpack.c.bf16 %v149, %v137
    %v282 = vpack.c.bf16 %v150, %v138
    %v283 = vpack.c.bf16 %v151, %v139
    %v284 = vpack.c.bf16 %v152, %v140
    %v285 = vpack.c.bf16 %v153, %v141
    %v286 = vpack.c.bf16 %v154, %v142
    %v287 = vpack.c.bf16 %v155, %v143
    %v288 = vpack.c.bf16 %v156, %v144
    %v289 = vpack.c.bf16 %v157, %v145
    %v290 = vpack.c.bf16 %v158, %v146
    %v291 = vpack.c.bf16 %v159, %v147
    %v292 = vpack.c.bf16 %v160, %v148
    %v293 = vpack.c.bf16 %v173, %v161
    %v294 = vpack.c.bf16 %v174, %v162
    %v295 = vpack.c.bf16 %v175, %v163
    %v296 = vpack.c.bf16 %v176, %v164
    %v297 = vpack.c.bf16 %v177, %v165
    %v298 = vpack.c.bf16 %v178, %v166
    %v299 = vpack.c.bf16 %v179, %v167
    %v300 = vpack.c.bf16 %v180, %v168
    %v301 = vpack.c.bf16 %v181, %v169
    %v302 = vpack.c.bf16 %v182, %v170
    %v303 = vpack.c.bf16 %v183, %v171
    %v304 = vpack.c.bf16 %v184, %v172
    %v305 = vpack.c.bf16 %v197, %v185
    %v306 = vpack.c.bf16 %v198, %v186
    %v307 = vpack.c.bf16 %v199, %v187
    %v308 = vpack.c.bf16 %v200, %v188
    %v309 = vpack.c.bf16 %v201, %v189
    %v310 = vpack.c.bf16 %v202, %v190
    %v311 = vpack.c.bf16 %v203, %v191
    %v312 = vpack.c.bf16 %v204, %v192
    %v313 = vpack.c.bf16 %v205, %v193
    %v314 = vpack.c.bf16 %v206, %v194
    %v315 = vpack.c.bf16 %v207, %v195
    %v316 = vpack.c.bf16 %v208, %v196
    %v317 = vpack.c.bf16 %v221, %v209
    %v318 = vpack.c.bf16 %v222, %v210
    %v319 = vpack.c.bf16 %v223, %v211
    %v320 = vpack.c.bf16 %v224, %v212
    %v321 = vpack.c.bf16 %v225, %v213
    %v322 = vpack.c.bf16 %v226, %v214
    %v323 = vpack.c.bf16 %v227, %v215
    %v324 = vpack.c.bf16 %v228, %v216
    %v325 = vpack.c.bf16 %v229, %v217
    %v326 = vpack.c.bf16 %v230, %v218
    %v327 = vpack.c.bf16 %v231, %v219
    %v328 = vpack.c.bf16 %v232, %v220
    %v329 = vld [vmem:[#allocation2] sm:$0xf]
    %v330 = vld [vmem:[#allocation2 + $0x4] sm:$0xf]
    %v331 = vld [vmem:[#allocation2 + $0x8] sm:$0xf]
    %v332 = vld [vmem:[#allocation2 + $0xc] sm:$0xf]
    %v333 = vld [vmem:[#allocation2 + $0x10] sm:$0xf]
    %v334 = vld [vmem:[#allocation2 + $0x14] sm:$0xf]
    %v335 = vld [vmem:[#allocation2 + $0x18] sm:$0xf]
    %v336 = vld [vmem:[#allocation2 + $0x1c] sm:$0xf]
    %v337 = vld [vmem:[#allocation2 + $0x20] sm:$0xf]
    %v338 = vld [vmem:[#allocation2 + $0x24] sm:$0xf]
    %v339 = vld [vmem:[#allocation2 + $0x28] sm:$0xf]
    %v340 = vld [vmem:[#allocation2 + $0x2c] sm:$0xf]
    %v341 = vld [vmem:[#allocation2 + $0x30] sm:$0xf]
    %v342 = vld [vmem:[#allocation2 + $0x34] sm:$0xf]
    %v343 = vld [vmem:[#allocation2 + $0x38] sm:$0xf]
    %v344 = vld [vmem:[#allocation2 + $0x3c] sm:$0xf]
    %v345 = vld [vmem:[#allocation2 + $0x40] sm:$0xf]
    %v346 = vld [vmem:[#allocation2 + $0x44] sm:$0xf]
    %v347 = vld [vmem:[#allocation2 + $0x48] sm:$0xf]
    %v348 = vld [vmem:[#allocation2 + $0x4c] sm:$0xf]
    %v349 = vld [vmem:[#allocation2 + $0x50] sm:$0xf]
    %v350 = vld [vmem:[#allocation2 + $0x54] sm:$0xf]
    %v351 = vld [vmem:[#allocation2 + $0x58] sm:$0xf]
    %v352 = vld [vmem:[#allocation2 + $0x5c] sm:$0xf]
    %v353 = vld [vmem:[#allocation2 + $0x60] sm:$0xf]
    %v354 = vld [vmem:[#allocation2 + $0x64] sm:$0xf]
    %v355 = vld [vmem:[#allocation2 + $0x68] sm:$0xf]
    %v356 = vld [vmem:[#allocation2 + $0x6c] sm:$0xf]
    %v357 = vld [vmem:[#allocation2 + $0x70] sm:$0xf]
    %v358 = vld [vmem:[#allocation2 + $0x74] sm:$0xf]
    %v359 = vld [vmem:[#allocation2 + $0x78] sm:$0xf]
    %v360 = vld [vmem:[#allocation2 + $0x7c] sm:$0xf]
    %v361 = vld [vmem:[#allocation2 + $0x80] sm:$0xf]
    %v362 = vld [vmem:[#allocation2 + $0x84] sm:$0xf]
    %v363 = vld [vmem:[#allocation2 + $0x88] sm:$0xf]
    %v364 = vld [vmem:[#allocation2 + $0x8c] sm:$0xf]
    %v365 = vld [vmem:[#allocation2 + $0x90] sm:$0xf]
    %v366 = vld [vmem:[#allocation2 + $0x94] sm:$0xf]
    %v367 = vld [vmem:[#allocation2 + $0x98] sm:$0xf]
    %v368 = vld [vmem:[#allocation2 + $0x9c] sm:$0xf]
    %v369 = vld [vmem:[#allocation2 + $0xa0] sm:$0xf]
    %v370 = vld [vmem:[#allocation2 + $0xa4] sm:$0xf]
    %v371 = vld [vmem:[#allocation2 + $0xa8] sm:$0xf]
    %v372 = vld [vmem:[#allocation2 + $0xac] sm:$0xf]
    %v373 = vld [vmem:[#allocation2 + $0xb0] sm:$0xf]
    %v374 = vld [vmem:[#allocation2 + $0xb4] sm:$0xf]
    %v375 = vld [vmem:[#allocation2 + $0xb8] sm:$0xf]
    %v376 = vld [vmem:[#allocation2 + $0xbc] sm:$0xf]
    %v377 = vld [vmem:[#allocation2 + $0xc0] sm:$0xf]
    %v378 = vld [vmem:[#allocation2 + $0xc4] sm:$0xf]
    %v379 = vld [vmem:[#allocation2 + $0xc8] sm:$0xf]
    %v380 = vld [vmem:[#allocation2 + $0xcc] sm:$0xf]
    %v381 = vld [vmem:[#allocation2 + $0xd0] sm:$0xf]
    %v382 = vld [vmem:[#allocation2 + $0xd4] sm:$0xf]
    %v383 = vld [vmem:[#allocation2 + $0xd8] sm:$0xf]
    %v384 = vld [vmem:[#allocation2 + $0xdc] sm:$0xf]
    %v385 = vld [vmem:[#allocation2 + $0xe0] sm:$0xf]
    %v386 = vld [vmem:[#allocation2 + $0xe4] sm:$0xf]
    %v387 = vld [vmem:[#allocation2 + $0xe8] sm:$0xf]
    %v388 = vld [vmem:[#allocation2 + $0xec] sm:$0xf]
    %v389 = vld [vmem:[#allocation2 + $0xf0] sm:$0xf]
    %v390 = vld [vmem:[#allocation2 + $0xf4] sm:$0xf]
    %v391 = vld [vmem:[#allocation2 + $0xf8] sm:$0xf]
    %v392 = vld [vmem:[#allocation2 + $0xfc] sm:$0xf]
    %v393 = vld [vmem:[#allocation2 + $0x100] sm:$0xf]
    %v394 = vld [vmem:[#allocation2 + $0x104] sm:$0xf]
    %v395 = vld [vmem:[#allocation2 + $0x108] sm:$0xf]
    %v396 = vld [vmem:[#allocation2 + $0x10c] sm:$0xf]
    %v397 = vld [vmem:[#allocation2 + $0x110] sm:$0xf]
    %v398 = vld [vmem:[#allocation2 + $0x114] sm:$0xf]
    %v399 = vld [vmem:[#allocation2 + $0x118] sm:$0xf]
    %v400 = vld [vmem:[#allocation2 + $0x11c] sm:$0xf]
    %v401 = vld [vmem:[#allocation2 + $0x120] sm:$0xf]
    %v402 = vld [vmem:[#allocation2 + $0x124] sm:$0xf]
    %v403 = vld [vmem:[#allocation2 + $0x128] sm:$0xf]
    %v404 = vld [vmem:[#allocation2 + $0x12c] sm:$0xf]
    %v405 = vld [vmem:[#allocation2 + $0x130] sm:$0xf]
    %v406 = vld [vmem:[#allocation2 + $0x134] sm:$0xf]
    %v407 = vld [vmem:[#allocation2 + $0x138] sm:$0xf]
    %v408 = vld [vmem:[#allocation2 + $0x13c] sm:$0xf]
    %v409 = vld [vmem:[#allocation2 + $0x140] sm:$0xf]
    %v410 = vld [vmem:[#allocation2 + $0x144] sm:$0xf]
    %v411 = vld [vmem:[#allocation2 + $0x148] sm:$0xf]
    %v412 = vld [vmem:[#allocation2 + $0x14c] sm:$0xf]
    %v413 = vld [vmem:[#allocation2 + $0x150] sm:$0xf]
    %v414 = vld [vmem:[#allocation2 + $0x154] sm:$0xf]
    %v415 = vld [vmem:[#allocation2 + $0x158] sm:$0xf]
    %v416 = vld [vmem:[#allocation2 + $0x15c] sm:$0xf]
    %v417 = vld [vmem:[#allocation2 + $0x160] sm:$0xf]
    %v418 = vld [vmem:[#allocation2 + $0x164] sm:$0xf]
    %v419 = vld [vmem:[#allocation2 + $0x168] sm:$0xf]
    %v420 = vld [vmem:[#allocation2 + $0x16c] sm:$0xf]
    %v421 = vld [vmem:[#allocation2 + $0x170] sm:$0xf]
    %v422 = vld [vmem:[#allocation2 + $0x174] sm:$0xf]
    %v423 = vld [vmem:[#allocation2 + $0x178] sm:$0xf]
    %v424 = vld [vmem:[#allocation2 + $0x17c] sm:$0xf]
    %v425 = vld [vmem:[#allocation2 + $0x180] sm:$0xf]
    %v426 = vld [vmem:[#allocation2 + $0x184] sm:$0xf]
    %v427 = vld [vmem:[#allocation2 + $0x188] sm:$0xf]
    %v428 = vld [vmem:[#allocation2 + $0x18c] sm:$0xf]
    %v429 = vld [vmem:[#allocation2 + $0x190] sm:$0xf]
    %v430 = vld [vmem:[#allocation2 + $0x194] sm:$0xf]
    %v431 = vld [vmem:[#allocation2 + $0x198] sm:$0xf]
    %v432 = vld [vmem:[#allocation2 + $0x19c] sm:$0xf]
    %v433 = vld [vmem:[#allocation2 + $0x1a0] sm:$0xf]
    %v434 = vld [vmem:[#allocation2 + $0x1a4] sm:$0xf]
    %v435 = vld [vmem:[#allocation2 + $0x1a8] sm:$0xf]
    %v436 = vld [vmem:[#allocation2 + $0x1ac] sm:$0xf]
    %v437 = vld [vmem:[#allocation2 + $0x1b0] sm:$0xf]
    %v438 = vld [vmem:[#allocation2 + $0x1b4] sm:$0xf]
    %v439 = vld [vmem:[#allocation2 + $0x1b8] sm:$0xf]
    %v440 = vld [vmem:[#allocation2 + $0x1bc] sm:$0xf]
    %v441 = vld [vmem:[#allocation2 + $0x1c0] sm:$0xf]
    %v442 = vld [vmem:[#allocation2 + $0x1c4] sm:$0xf]
    %v443 = vld [vmem:[#allocation2 + $0x1c8] sm:$0xf]
    %v444 = vld [vmem:[#allocation2 + $0x1cc] sm:$0xf]
    %v445 = vld [vmem:[#allocation2 + $0x1d0] sm:$0xf]
    %v446 = vld [vmem:[#allocation2 + $0x1d4] sm:$0xf]
    %v447 = vld [vmem:[#allocation2 + $0x1d8] sm:$0xf]
    %v448 = vld [vmem:[#allocation2 + $0x1dc] sm:$0xf]
    %v449 = vld [vmem:[#allocation2 + $0x1e0] sm:$0xf]
    %v450 = vld [vmem:[#allocation2 + $0x1e4] sm:$0xf]
    %v451 = vld [vmem:[#allocation2 + $0x1e8] sm:$0xf]
    %v452 = vld [vmem:[#allocation2 + $0x1ec] sm:$0xf]
    %v453 = vld [vmem:[#allocation2 + $0x1f0] sm:$0xf]
    %v454 = vld [vmem:[#allocation2 + $0x1f4] sm:$0xf]
    %v455 = vld [vmem:[#allocation2 + $0x1f8] sm:$0xf]
    %v456 = vld [vmem:[#allocation2 + $0x1fc] sm:$0xf]
    %v457 = vld [vmem:[#allocation2 + $0x200] sm:$0xf]
    %v458 = vld [vmem:[#allocation2 + $0x204] sm:$0xf]
    %v459 = vld [vmem:[#allocation2 + $0x208] sm:$0xf]
    %v460 = vld [vmem:[#allocation2 + $0x20c] sm:$0xf]
    %v461 = vld [vmem:[#allocation2 + $0x210] sm:$0xf]
    %v462 = vld [vmem:[#allocation2 + $0x214] sm:$0xf]
    %v463 = vld [vmem:[#allocation2 + $0x218] sm:$0xf]
    %v464 = vld [vmem:[#allocation2 + $0x21c] sm:$0xf]
    %v465 = vld [vmem:[#allocation2 + $0x220] sm:$0xf]
    %v466 = vld [vmem:[#allocation2 + $0x224] sm:$0xf]
    %v467 = vld [vmem:[#allocation2 + $0x228] sm:$0xf]
    %v468 = vld [vmem:[#allocation2 + $0x22c] sm:$0xf]
    %v469 = vld [vmem:[#allocation2 + $0x230] sm:$0xf]
    %v470 = vld [vmem:[#allocation2 + $0x234] sm:$0xf]
    %v471 = vld [vmem:[#allocation2 + $0x238] sm:$0xf]
    %v472 = vld [vmem:[#allocation2 + $0x23c] sm:$0xf]
    %v473 = vld [vmem:[#allocation2 + $0x240] sm:$0xf]
    %v474 = vld [vmem:[#allocation2 + $0x244] sm:$0xf]
    %v475 = vld [vmem:[#allocation2 + $0x248] sm:$0xf]
    %v476 = vld [vmem:[#allocation2 + $0x24c] sm:$0xf]
    %v477 = vld [vmem:[#allocation2 + $0x250] sm:$0xf]
    %v478 = vld [vmem:[#allocation2 + $0x254] sm:$0xf]
    %v479 = vld [vmem:[#allocation2 + $0x258] sm:$0xf]
    %v480 = vld [vmem:[#allocation2 + $0x25c] sm:$0xf]
    %v481 = vld [vmem:[#allocation2 + $0x260] sm:$0xf]
    %v482 = vld [vmem:[#allocation2 + $0x264] sm:$0xf]
    %v483 = vld [vmem:[#allocation2 + $0x268] sm:$0xf]
    %v484 = vld [vmem:[#allocation2 + $0x26c] sm:$0xf]
    %v485 = vld [vmem:[#allocation2 + $0x270] sm:$0xf]
    %v486 = vld [vmem:[#allocation2 + $0x274] sm:$0xf]
    %v487 = vld [vmem:[#allocation2 + $0x278] sm:$0xf]
    %v488 = vld [vmem:[#allocation2 + $0x27c] sm:$0xf]
    %v489 = vld [vmem:[#allocation2 + $0x280] sm:$0xf]
    %v490 = vld [vmem:[#allocation2 + $0x284] sm:$0xf]
    %v491 = vld [vmem:[#allocation2 + $0x288] sm:$0xf]
    %v492 = vld [vmem:[#allocation2 + $0x28c] sm:$0xf]
    %v493 = vld [vmem:[#allocation2 + $0x290] sm:$0xf]
    %v494 = vld [vmem:[#allocation2 + $0x294] sm:$0xf]
    %v495 = vld [vmem:[#allocation2 + $0x298] sm:$0xf]
    %v496 = vld [vmem:[#allocation2 + $0x29c] sm:$0xf]
    %v497 = vld [vmem:[#allocation2 + $0x2a0] sm:$0xf]
    %v498 = vld [vmem:[#allocation2 + $0x2a4] sm:$0xf]
    %v499 = vld [vmem:[#allocation2 + $0x2a8] sm:$0xf]
    %v500 = vld [vmem:[#allocation2 + $0x2ac] sm:$0xf]
    %v501 = vld [vmem:[#allocation2 + $0x2b0] sm:$0xf]
    %v502 = vld [vmem:[#allocation2 + $0x2b4] sm:$0xf]
    %v503 = vld [vmem:[#allocation2 + $0x2b8] sm:$0xf]
    %v504 = vld [vmem:[#allocation2 + $0x2bc] sm:$0xf]
    %v505 = vld [vmem:[#allocation2 + $0x2c0] sm:$0xf]
    %v506 = vld [vmem:[#allocation2 + $0x2c4] sm:$0xf]
    %v507 = vld [vmem:[#allocation2 + $0x2c8] sm:$0xf]
    %v508 = vld [vmem:[#allocation2 + $0x2cc] sm:$0xf]
    %v509 = vld [vmem:[#allocation2 + $0x2d0] sm:$0xf]
    %v510 = vld [vmem:[#allocation2 + $0x2d4] sm:$0xf]
    %v511 = vld [vmem:[#allocation2 + $0x2d8] sm:$0xf]
    %v512 = vld [vmem:[#allocation2 + $0x2dc] sm:$0xf]
    %v513 = vld [vmem:[#allocation2 + $0x2e0] sm:$0xf]
    %v514 = vld [vmem:[#allocation2 + $0x2e4] sm:$0xf]
    %v515 = vld [vmem:[#allocation2 + $0x2e8] sm:$0xf]
    %v516 = vld [vmem:[#allocation2 + $0x2ec] sm:$0xf]
    %v517 = vld [vmem:[#allocation2 + $0x2f0] sm:$0xf]
    %v518 = vld [vmem:[#allocation2 + $0x2f4] sm:$0xf]
    %v519 = vld [vmem:[#allocation2 + $0x2f8] sm:$0xf]
    %v520 = vld [vmem:[#allocation2 + $0x2fc] sm:$0xf]
    %v521 = vld [vmem:[%s2] sm:$0x1]
    %v523 = vlaneseq
    %v524 = vshrl.u32 %v523, 7
    %v525 = vsub.s32 0, %v524
    %v526 = vrot.slane %v521, %v525
    %v720 = vunpack.c.l.b16 %v329
    %v721 = vunpack.c.l.b16 %v330
    %v722 = vunpack.c.l.b16 %v331
    %v723 = vunpack.c.l.b16 %v332
    %v724 = vunpack.c.l.b16 %v333
    %v725 = vunpack.c.l.b16 %v334
    %v726 = vunpack.c.l.b16 %v335
    %v727 = vunpack.c.l.b16 %v336
    %v728 = vunpack.c.l.b16 %v337
    %v729 = vunpack.c.l.b16 %v338
    %v730 = vunpack.c.l.b16 %v339
    %v731 = vunpack.c.l.b16 %v340
    %v732 = vunpack.c.l.b16 %v341
    %v733 = vunpack.c.l.b16 %v342
    %v734 = vunpack.c.l.b16 %v343
    %v735 = vunpack.c.l.b16 %v344
    %v736 = vunpack.c.l.b16 %v345
    %v737 = vunpack.c.l.b16 %v346
    %v738 = vunpack.c.l.b16 %v347
    %v739 = vunpack.c.l.b16 %v348
    %v740 = vunpack.c.l.b16 %v349
    %v741 = vunpack.c.l.b16 %v350
    %v742 = vunpack.c.l.b16 %v351
    %v743 = vunpack.c.l.b16 %v352
    %v744 = vunpack.c.l.b16 %v353
    %v745 = vunpack.c.l.b16 %v354
    %v746 = vunpack.c.l.b16 %v355
    %v747 = vunpack.c.l.b16 %v356
    %v748 = vunpack.c.l.b16 %v357
    %v749 = vunpack.c.l.b16 %v358
    %v750 = vunpack.c.l.b16 %v359
    %v751 = vunpack.c.l.b16 %v360
    %v752 = vunpack.c.l.b16 %v361
    %v753 = vunpack.c.l.b16 %v362
    %v754 = vunpack.c.l.b16 %v363
    %v755 = vunpack.c.l.b16 %v364
    %v756 = vunpack.c.l.b16 %v365
    %v757 = vunpack.c.l.b16 %v366
    %v758 = vunpack.c.l.b16 %v367
    %v759 = vunpack.c.l.b16 %v368
    %v760 = vunpack.c.l.b16 %v369
    %v761 = vunpack.c.l.b16 %v370
    %v762 = vunpack.c.l.b16 %v371
    %v763 = vunpack.c.l.b16 %v372
    %v764 = vunpack.c.l.b16 %v373
    %v765 = vunpack.c.l.b16 %v374
    %v766 = vunpack.c.l.b16 %v375
    %v767 = vunpack.c.l.b16 %v376
    %v768 = vunpack.c.l.b16 %v377
    %v769 = vunpack.c.l.b16 %v378
    %v770 = vunpack.c.l.b16 %v379
    %v771 = vunpack.c.l.b16 %v380
    %v772 = vunpack.c.l.b16 %v381
    %v773 = vunpack.c.l.b16 %v382
    %v774 = vunpack.c.l.b16 %v383
    %v775 = vunpack.c.l.b16 %v384
    %v776 = vunpack.c.l.b16 %v385
    %v777 = vunpack.c.l.b16 %v386
    %v778 = vunpack.c.l.b16 %v387
    %v779 = vunpack.c.l.b16 %v388
    %v780 = vunpack.c.l.b16 %v389
    %v781 = vunpack.c.l.b16 %v390
    %v782 = vunpack.c.l.b16 %v391
    %v783 = vunpack.c.l.b16 %v392
    %v784 = vunpack.c.l.b16 %v393
    %v785 = vunpack.c.l.b16 %v394
    %v786 = vunpack.c.l.b16 %v395
    %v787 = vunpack.c.l.b16 %v396
    %v788 = vunpack.c.l.b16 %v397
    %v789 = vunpack.c.l.b16 %v398
    %v790 = vunpack.c.l.b16 %v399
    %v791 = vunpack.c.l.b16 %v400
    %v792 = vunpack.c.l.b16 %v401
    %v793 = vunpack.c.l.b16 %v402
    %v794 = vunpack.c.l.b16 %v403
    %v795 = vunpack.c.l.b16 %v404
    %v796 = vunpack.c.l.b16 %v405
    %v797 = vunpack.c.l.b16 %v406
    %v798 = vunpack.c.l.b16 %v407
    %v799 = vunpack.c.l.b16 %v408
    %v800 = vunpack.c.l.b16 %v409
    %v801 = vunpack.c.l.b16 %v410
    %v802 = vunpack.c.l.b16 %v411
    %v803 = vunpack.c.l.b16 %v412
    %v804 = vunpack.c.l.b16 %v413
    %v805 = vunpack.c.l.b16 %v414
    %v806 = vunpack.c.l.b16 %v415
    %v807 = vunpack.c.l.b16 %v416
    %v808 = vunpack.c.l.b16 %v417
    %v809 = vunpack.c.l.b16 %v418
    %v810 = vunpack.c.l.b16 %v419
    %v811 = vunpack.c.l.b16 %v420
    %v812 = vunpack.c.l.b16 %v421
    %v813 = vunpack.c.l.b16 %v422
    %v814 = vunpack.c.l.b16 %v423
    %v815 = vunpack.c.l.b16 %v424
    %v816 = vunpack.c.l.b16 %v425
    %v817 = vunpack.c.l.b16 %v426
    %v818 = vunpack.c.l.b16 %v427
    %v819 = vunpack.c.l.b16 %v428
    %v820 = vunpack.c.l.b16 %v429
    %v821 = vunpack.c.l.b16 %v430
    %v822 = vunpack.c.l.b16 %v431
    %v823 = vunpack.c.l.b16 %v432
    %v824 = vunpack.c.l.b16 %v433
    %v825 = vunpack.c.l.b16 %v434
    %v826 = vunpack.c.l.b16 %v435
    %v827 = vunpack.c.l.b16 %v436
    %v828 = vunpack.c.l.b16 %v437
    %v829 = vunpack.c.l.b16 %v438
    %v830 = vunpack.c.l.b16 %v439
    %v831 = vunpack.c.l.b16 %v440
    %v832 = vunpack.c.l.b16 %v441
    %v833 = vunpack.c.l.b16 %v442
    %v834 = vunpack.c.l.b16 %v443
    %v835 = vunpack.c.l.b16 %v444
    %v836 = vunpack.c.l.b16 %v445
    %v837 = vunpack.c.l.b16 %v446
    %v838 = vunpack.c.l.b16 %v447
    %v839 = vunpack.c.l.b16 %v448
    %v840 = vunpack.c.l.b16 %v449
    %v841 = vunpack.c.l.b16 %v450
    %v842 = vunpack.c.l.b16 %v451
    %v843 = vunpack.c.l.b16 %v452
    %v844 = vunpack.c.l.b16 %v453
    %v845 = vunpack.c.l.b16 %v454
    %v846 = vunpack.c.l.b16 %v455
    %v847 = vunpack.c.l.b16 %v456
    %v848 = vunpack.c.l.b16 %v457
    %v849 = vunpack.c.l.b16 %v458
    %v850 = vunpack.c.l.b16 %v459
    %v851 = vunpack.c.l.b16 %v460
    %v852 = vunpack.c.l.b16 %v461
    %v853 = vunpack.c.l.b16 %v462
    %v854 = vunpack.c.l.b16 %v463
    %v855 = vunpack.c.l.b16 %v464
    %v856 = vunpack.c.l.b16 %v465
    %v857 = vunpack.c.l.b16 %v466
    %v858 = vunpack.c.l.b16 %v467
    %v859 = vunpack.c.l.b16 %v468
    %v860 = vunpack.c.l.b16 %v469
    %v861 = vunpack.c.l.b16 %v470
    %v862 = vunpack.c.l.b16 %v471
    %v863 = vunpack.c.l.b16 %v472
    %v864 = vunpack.c.l.b16 %v473
    %v865 = vunpack.c.l.b16 %v474
    %v866 = vunpack.c.l.b16 %v475
    %v867 = vunpack.c.l.b16 %v476
    %v868 = vunpack.c.l.b16 %v477
    %v869 = vunpack.c.l.b16 %v478
    %v870 = vunpack.c.l.b16 %v479
    %v871 = vunpack.c.l.b16 %v480
    %v872 = vunpack.c.l.b16 %v481
    %v873 = vunpack.c.l.b16 %v482
    %v874 = vunpack.c.l.b16 %v483
    %v875 = vunpack.c.l.b16 %v484
    %v876 = vunpack.c.l.b16 %v485
    %v877 = vunpack.c.l.b16 %v486
    %v878 = vunpack.c.l.b16 %v487
    %v879 = vunpack.c.l.b16 %v488
    %v880 = vunpack.c.l.b16 %v489
    %v881 = vunpack.c.l.b16 %v490
    %v882 = vunpack.c.l.b16 %v491
    %v883 = vunpack.c.l.b16 %v492
    %v884 = vunpack.c.l.b16 %v493
    %v885 = vunpack.c.l.b16 %v494
    %v886 = vunpack.c.l.b16 %v495
    %v887 = vunpack.c.l.b16 %v496
    %v888 = vunpack.c.l.b16 %v497
    %v889 = vunpack.c.l.b16 %v498
    %v890 = vunpack.c.l.b16 %v499
    %v891 = vunpack.c.l.b16 %v500
    %v892 = vunpack.c.l.b16 %v501
    %v893 = vunpack.c.l.b16 %v502
    %v894 = vunpack.c.l.b16 %v503
    %v895 = vunpack.c.l.b16 %v504
    %v896 = vunpack.c.l.b16 %v505
    %v897 = vunpack.c.l.b16 %v506
    %v898 = vunpack.c.l.b16 %v507
    %v899 = vunpack.c.l.b16 %v508
    %v900 = vunpack.c.l.b16 %v509
    %v901 = vunpack.c.l.b16 %v510
    %v902 = vunpack.c.l.b16 %v511
    %v903 = vunpack.c.l.b16 %v512
    %v904 = vunpack.c.l.b16 %v513
    %v905 = vunpack.c.l.b16 %v514
    %v906 = vunpack.c.l.b16 %v515
    %v907 = vunpack.c.l.b16 %v516
    %v908 = vunpack.c.l.b16 %v517
    %v909 = vunpack.c.l.b16 %v518
    %v910 = vunpack.c.l.b16 %v519
    %v911 = vunpack.c.l.b16 %v520
    %v912 = vpack.c.b16 %v721, %v720
    %v913 = vpack.c.b16 %v723, %v722
    %v914 = vpack.c.b16 %v725, %v724
    %v915 = vpack.c.b16 %v727, %v726
    %v916 = vpack.c.b16 %v729, %v728
    %v917 = vpack.c.b16 %v731, %v730
    %v918 = vpack.c.b16 %v733, %v732
    %v919 = vpack.c.b16 %v735, %v734
    %v920 = vpack.c.b16 %v737, %v736
    %v921 = vpack.c.b16 %v739, %v738
    %v922 = vpack.c.b16 %v741, %v740
    %v923 = vpack.c.b16 %v743, %v742
    %v924 = vpack.c.b16 %v745, %v744
    %v925 = vpack.c.b16 %v747, %v746
    %v926 = vpack.c.b16 %v749, %v748
    %v927 = vpack.c.b16 %v751, %v750
    %v928 = vpack.c.b16 %v753, %v752
    %v929 = vpack.c.b16 %v755, %v754
    %v930 = vpack.c.b16 %v757, %v756
    %v931 = vpack.c.b16 %v759, %v758
    %v932 = vpack.c.b16 %v761, %v760
    %v933 = vpack.c.b16 %v763, %v762
    %v934 = vpack.c.b16 %v765, %v764
    %v935 = vpack.c.b16 %v767, %v766
    %v936 = vpack.c.b16 %v769, %v768
    %v937 = vpack.c.b16 %v771, %v770
    %v938 = vpack.c.b16 %v773, %v772
    %v939 = vpack.c.b16 %v775, %v774
    %v940 = vpack.c.b16 %v777, %v776
    %v941 = vpack.c.b16 %v779, %v778
    %v942 = vpack.c.b16 %v781, %v780
    %v943 = vpack.c.b16 %v783, %v782
    %v944 = vpack.c.b16 %v785, %v784
    %v945 = vpack.c.b16 %v787, %v786
    %v946 = vpack.c.b16 %v789, %v788
    %v947 = vpack.c.b16 %v791, %v790
    %v948 = vpack.c.b16 %v793, %v792
    %v949 = vpack.c.b16 %v795, %v794
    %v950 = vpack.c.b16 %v797, %v796
    %v951 = vpack.c.b16 %v799, %v798
    %v952 = vpack.c.b16 %v801, %v800
    %v953 = vpack.c.b16 %v803, %v802
    %v954 = vpack.c.b16 %v805, %v804
    %v955 = vpack.c.b16 %v807, %v806
    %v956 = vpack.c.b16 %v809, %v808
    %v957 = vpack.c.b16 %v811, %v810
    %v958 = vpack.c.b16 %v813, %v812
    %v959 = vpack.c.b16 %v815, %v814
    %v960 = vpack.c.b16 %v817, %v816
    %v961 = vpack.c.b16 %v819, %v818
    %v962 = vpack.c.b16 %v821, %v820
    %v963 = vpack.c.b16 %v823, %v822
    %v964 = vpack.c.b16 %v825, %v824
    %v965 = vpack.c.b16 %v827, %v826
    %v966 = vpack.c.b16 %v829, %v828
    %v967 = vpack.c.b16 %v831, %v830
    %v968 = vpack.c.b16 %v833, %v832
    %v969 = vpack.c.b16 %v835, %v834
    %v970 = vpack.c.b16 %v837, %v836
    %v971 = vpack.c.b16 %v839, %v838
    %v972 = vpack.c.b16 %v841, %v840
    %v973 = vpack.c.b16 %v843, %v842
    %v974 = vpack.c.b16 %v845, %v844
    %v975 = vpack.c.b16 %v847, %v846
    %v976 = vpack.c.b16 %v849, %v848
    %v977 = vpack.c.b16 %v851, %v850
    %v978 = vpack.c.b16 %v853, %v852
    %v979 = vpack.c.b16 %v855, %v854
    %v980 = vpack.c.b16 %v857, %v856
    %v981 = vpack.c.b16 %v859, %v858
    %v982 = vpack.c.b16 %v861, %v860
    %v983 = vpack.c.b16 %v863, %v862
    %v984 = vpack.c.b16 %v865, %v864
    %v985 = vpack.c.b16 %v867, %v866
    %v986 = vpack.c.b16 %v869, %v868
    %v987 = vpack.c.b16 %v871, %v870
    %v988 = vpack.c.b16 %v873, %v872
    %v989 = vpack.c.b16 %v875, %v874
    %v990 = vpack.c.b16 %v877, %v876
    %v991 = vpack.c.b16 %v879, %v878
    %v992 = vpack.c.b16 %v881, %v880
    %v993 = vpack.c.b16 %v883, %v882
    %v994 = vpack.c.b16 %v885, %v884
    %v995 = vpack.c.b16 %v887, %v886
    %v996 = vpack.c.b16 %v889, %v888
    %v997 = vpack.c.b16 %v891, %v890
    %v998 = vpack.c.b16 %v893, %v892
    %v999 = vpack.c.b16 %v895, %v894
    %v1000 = vpack.c.b16 %v897, %v896
    %v1001 = vpack.c.b16 %v899, %v898
    %v1002 = vpack.c.b16 %v901, %v900
    %v1003 = vpack.c.b16 %v903, %v902
    %v1004 = vpack.c.b16 %v905, %v904
    %v1005 = vpack.c.b16 %v907, %v906
    %v1006 = vpack.c.b16 %v909, %v908
    %v1007 = vpack.c.b16 %v911, %v910
    %1104 = vmatprep.subr.bf16.mxu0 0
    %1105 = vmatpush1.bf16.msra.mxu0 %v919
    %1106 = vmatprep.subr.bf16.mxu0 0
    %1107 = vmatpush1.bf16.msra.mxu0 %v918
    %1108 = vmatprep.subr.bf16.mxu0 0
    %1109 = vmatpush1.bf16.msra.mxu0 %v917
    %1110 = vmatprep.subr.bf16.mxu0 0
    %1111 = vmatpush1.bf16.msra.mxu0 %v916
    %1112 = vmatprep.subr.bf16.mxu0 0
    %1113 = vmatpush1.bf16.msra.mxu0 %v915
    %1114 = vmatprep.subr.bf16.mxu0 0
    %1115 = vmatpush1.bf16.msra.mxu0 %v914
    %1116 = vmatprep.subr.bf16.mxu0 0
    %1117 = vmatpush1.bf16.msra.mxu0 %v913
    %1118 = vmatprep.subr.bf16.mxu0 0
    %1119 = vmatpush1.bf16.msra.mxu0 %v912
    %1120 = vmatprep.subr.bf16.mxu0 0
    %1121 = vmatpush2.bf16.msra.mxu0 %v927
    %1122 = vmatprep.subr.bf16.mxu0 0
    %1123 = vmatpush2.bf16.msra.mxu0 %v926
    %1124 = vmatprep.subr.bf16.mxu0 0
    %1125 = vmatpush2.bf16.msra.mxu0 %v925
    %1126 = vmatprep.subr.bf16.mxu0 0
    %1127 = vmatpush2.bf16.msra.mxu0 %v924
    %1128 = vmatprep.subr.bf16.mxu0 0
    %1129 = vmatpush2.bf16.msra.mxu0 %v923
    %1130 = vmatprep.subr.bf16.mxu0 0
    %1131 = vmatpush2.bf16.msra.mxu0 %v922
    %1132 = vmatprep.subr.bf16.mxu0 0
    %1133 = vmatpush2.bf16.msra.mxu0 %v921
    %1134 = vmatprep.subr.bf16.mxu0 0
    %1135 = vmatpush2.bf16.msra.mxu0 %v920
    %1136 = vmatprep.mubr.bf16.mxu0 %v234
    %1137 = vmatmul.mubr.bf16.gmra.mxu0 %v233
    %v1138 = vpop.f32.mrf.mxu0
    %v1139 = vadd.f32 %v526, %v1138
    %v1140 = vpop.f32.mrf.mxu0
    %v1141 = vpop.f32.mrf.mxu0
    %v1142 = vadd.f32 %v526, %v1141
    %v1143 = vpop.f32.mrf.mxu0
    %1144 = vmatprep.mubr.bf16.mxu0 %v246
    %1145 = vmatmul.mubr.bf16.gmra.mxu0 %v245
    %v1146 = vpop.f32.mrf.mxu0
    %v1147 = vadd.f32 %v526, %v1146
    %v1148 = vpop.f32.mrf.mxu0
    %v1149 = vpop.f32.mrf.mxu0
    %v1150 = vadd.f32 %v526, %v1149
    %v1151 = vpop.f32.mrf.mxu0
    %1152 = vmatprep.mubr.bf16.mxu0 %v258
    %1153 = vmatmul.mubr.bf16.gmra.mxu0 %v257
    %v1154 = vpop.f32.mrf.mxu0
    %v1155 = vadd.f32 %v526, %v1154
    %v1156 = vpop.f32.mrf.mxu0
    %v1157 = vpop.f32.mrf.mxu0
    %v1158 = vadd.f32 %v526, %v1157
    %v1159 = vpop.f32.mrf.mxu0
    %1160 = vmatprep.mubr.bf16.mxu0 %v270
    %1161 = vmatmul.mubr.bf16.gmra.mxu0 %v269
    %v1162 = vpop.f32.mrf.mxu0
    %v1163 = vadd.f32 %v526, %v1162
    %v1164 = vpop.f32.mrf.mxu0
    %v1165 = vpop.f32.mrf.mxu0
    %v1166 = vadd.f32 %v526, %v1165
    %v1167 = vpop.f32.mrf.mxu0
    %1168 = vmatprep.mubr.bf16.mxu0 %v282
    %1169 = vmatmul.mubr.bf16.gmra.mxu0 %v281
    %v1170 = vpop.f32.mrf.mxu0
    %v1171 = vadd.f32 %v526, %v1170
    %v1172 = vpop.f32.mrf.mxu0
    %v1173 = vpop.f32.mrf.mxu0
    %v1174 = vadd.f32 %v526, %v1173
    %v1175 = vpop.f32.mrf.mxu0
    %1176 = vmatprep.mubr.bf16.mxu0 %v294
    %1177 = vmatmul.mubr.bf16.gmra.mxu0 %v293
    %v1178 = vpop.f32.mrf.mxu0
    %v1179 = vadd.f32 %v526, %v1178
    %v1180 = vpop.f32.mrf.mxu0
    %v1181 = vpop.f32.mrf.mxu0
    %v1182 = vadd.f32 %v526, %v1181
    %v1183 = vpop.f32.mrf.mxu0
    %1184 = vmatprep.mubr.bf16.mxu0 %v306
    %1185 = vmatmul.mubr.bf16.gmra.mxu0 %v305
    %v1186 = vpop.f32.mrf.mxu0
    %v1187 = vadd.f32 %v526, %v1186
    %v1188 = vpop.f32.mrf.mxu0
    %v1189 = vpop.f32.mrf.mxu0
    %v1190 = vadd.f32 %v526, %v1189
    %v1191 = vpop.f32.mrf.mxu0
    %1192 = vmatprep.mubr.bf16.mxu0 %v318
    %1193 = vmatmul.mubr.bf16.gmra.mxu0 %v317
    %v1194 = vpop.f32.mrf.mxu0
    %v1195 = vadd.f32 %v526, %v1194
    %v1196 = vpop.f32.mrf.mxu0
    %v1197 = vpop.f32.mrf.mxu0
    %v1198 = vadd.f32 %v526, %v1197
    %v1199 = vpop.f32.mrf.mxu0
    %1200 = vdwg.mxu0
    %1201 = vmatprep.subr.bf16.mxu0 0
    %1202 = vmatpush1.bf16.msra.mxu0 %v935
    %1203 = vmatprep.subr.bf16.mxu0 0
    %1204 = vmatpush1.bf16.msra.mxu0 %v934
    %1205 = vmatprep.subr.bf16.mxu0 0
    %1206 = vmatpush1.bf16.msra.mxu0 %v933
    %1207 = vmatprep.subr.bf16.mxu0 0
    %1208 = vmatpush1.bf16.msra.mxu0 %v932
    %1209 = vmatprep.subr.bf16.mxu0 0
    %1210 = vmatpush1.bf16.msra.mxu0 %v931
    %1211 = vmatprep.subr.bf16.mxu0 0
    %1212 = vmatpush1.bf16.msra.mxu0 %v930
    %1213 = vmatprep.subr.bf16.mxu0 0
    %1214 = vmatpush1.bf16.msra.mxu0 %v929
    %1215 = vmatprep.subr.bf16.mxu0 0
    %1216 = vmatpush1.bf16.msra.mxu0 %v928
    %1217 = vmatprep.subr.bf16.mxu0 0
    %1218 = vmatpush2.bf16.msra.mxu0 %v943
    %1219 = vmatprep.subr.bf16.mxu0 0
    %1220 = vmatpush2.bf16.msra.mxu0 %v942
    %1221 = vmatprep.subr.bf16.mxu0 0
    %1222 = vmatpush2.bf16.msra.mxu0 %v941
    %1223 = vmatprep.subr.bf16.mxu0 0
    %1224 = vmatpush2.bf16.msra.mxu0 %v940
    %1225 = vmatprep.subr.bf16.mxu0 0
    %1226 = vmatpush2.bf16.msra.mxu0 %v939
    %1227 = vmatprep.subr.bf16.mxu0 0
    %1228 = vmatpush2.bf16.msra.mxu0 %v938
    %1229 = vmatprep.subr.bf16.mxu0 0
    %1230 = vmatpush2.bf16.msra.mxu0 %v937
    %1231 = vmatprep.subr.bf16.mxu0 0
    %1232 = vmatpush2.bf16.msra.mxu0 %v936
    %1233 = vmatprep.mubr.bf16.mxu0 %v236
    %1234 = vmatmul.mubr.bf16.gmra.mxu0 %v235
    %v1235 = vpop.f32.mrf.mxu0
    %v1236 = vadd.f32 %v1139, %v1235
    %v1237 = vpop.f32.mrf.mxu0
    %v1238 = vpop.f32.mrf.mxu0
    %v1239 = vadd.f32 %v1142, %v1238
    %v1240 = vpop.f32.mrf.mxu0
    %1241 = vmatprep.mubr.bf16.mxu0 %v248
    %1242 = vmatmul.mubr.bf16.gmra.mxu0 %v247
    %v1243 = vpop.f32.mrf.mxu0
    %v1244 = vadd.f32 %v1147, %v1243
    %v1245 = vpop.f32.mrf.mxu0
    %v1246 = vpop.f32.mrf.mxu0
    %v1247 = vadd.f32 %v1150, %v1246
    %v1248 = vpop.f32.mrf.mxu0
    %1249 = vmatprep.mubr.bf16.mxu0 %v260
    %1250 = vmatmul.mubr.bf16.gmra.mxu0 %v259
    %v1251 = vpop.f32.mrf.mxu0
    %v1252 = vadd.f32 %v1155, %v1251
    %v1253 = vpop.f32.mrf.mxu0
    %v1254 = vpop.f32.mrf.mxu0
    %v1255 = vadd.f32 %v1158, %v1254
    %v1256 = vpop.f32.mrf.mxu0
    %1257 = vmatprep.mubr.bf16.mxu0 %v272
    %1258 = vmatmul.mubr.bf16.gmra.mxu0 %v271
    %v1259 = vpop.f32.mrf.mxu0
    %v1260 = vadd.f32 %v1163, %v1259
    %v1261 = vpop.f32.mrf.mxu0
    %v1262 = vpop.f32.mrf.mxu0
    %v1263 = vadd.f32 %v1166, %v1262
    %v1264 = vpop.f32.mrf.mxu0
    %1265 = vmatprep.mubr.bf16.mxu0 %v284
    %1266 = vmatmul.mubr.bf16.gmra.mxu0 %v283
    %v1267 = vpop.f32.mrf.mxu0
    %v1268 = vadd.f32 %v1171, %v1267
    %v1269 = vpop.f32.mrf.mxu0
    %v1270 = vpop.f32.mrf.mxu0
    %v1271 = vadd.f32 %v1174, %v1270
    %v1272 = vpop.f32.mrf.mxu0
    %1273 = vmatprep.mubr.bf16.mxu0 %v296
    %1274 = vmatmul.mubr.bf16.gmra.mxu0 %v295
    %v1275 = vpop.f32.mrf.mxu0
    %v1276 = vadd.f32 %v1179, %v1275
    %v1277 = vpop.f32.mrf.mxu0
    %v1278 = vpop.f32.mrf.mxu0
    %v1279 = vadd.f32 %v1182, %v1278
    %v1280 = vpop.f32.mrf.mxu0
    %1281 = vmatprep.mubr.bf16.mxu0 %v308
    %1282 = vmatmul.mubr.bf16.gmra.mxu0 %v307
    %v1283 = vpop.f32.mrf.mxu0
    %v1284 = vadd.f32 %v1187, %v1283
    %v1285 = vpop.f32.mrf.mxu0
    %v1286 = vpop.f32.mrf.mxu0
    %v1287 = vadd.f32 %v1190, %v1286
    %v1288 = vpop.f32.mrf.mxu0
    %1289 = vmatprep.mubr.bf16.mxu0 %v320
    %1290 = vmatmul.mubr.bf16.gmra.mxu0 %v319
    %v1291 = vpop.f32.mrf.mxu0
    %v1292 = vadd.f32 %v1195, %v1291
    %v1293 = vpop.f32.mrf.mxu0
    %v1294 = vpop.f32.mrf.mxu0
    %v1295 = vadd.f32 %v1198, %v1294
    %v1296 = vpop.f32.mrf.mxu0
    %1297 = vdwg.mxu0
    %1298 = vmatprep.subr.bf16.mxu0 0
    %1299 = vmatpush1.bf16.msra.mxu0 %v951
    %1300 = vmatprep.subr.bf16.mxu0 0
    %1301 = vmatpush1.bf16.msra.mxu0 %v950
    %1302 = vmatprep.subr.bf16.mxu0 0
    %1303 = vmatpush1.bf16.msra.mxu0 %v949
    %1304 = vmatprep.subr.bf16.mxu0 0
    %1305 = vmatpush1.bf16.msra.mxu0 %v948
    %1306 = vmatprep.subr.bf16.mxu0 0
    %1307 = vmatpush1.bf16.msra.mxu0 %v947
    %1308 = vmatprep.subr.bf16.mxu0 0
    %1309 = vmatpush1.bf16.msra.mxu0 %v946
    %1310 = vmatprep.subr.bf16.mxu0 0
    %1311 = vmatpush1.bf16.msra.mxu0 %v945
    %1312 = vmatprep.subr.bf16.mxu0 0
    %1313 = vmatpush1.bf16.msra.mxu0 %v944
    %1314 = vmatprep.subr.bf16.mxu0 0
    %1315 = vmatpush2.bf16.msra.mxu0 %v959
    %1316 = vmatprep.subr.bf16.mxu0 0
    %1317 = vmatpush2.bf16.msra.mxu0 %v958
    %1318 = vmatprep.subr.bf16.mxu0 0
    %1319 = vmatpush2.bf16.msra.mxu0 %v957
    %1320 = vmatprep.subr.bf16.mxu0 0
    %1321 = vmatpush2.bf16.msra.mxu0 %v956
    %1322 = vmatprep.subr.bf16.mxu0 0
    %1323 = vmatpush2.bf16.msra.mxu0 %v955
    %1324 = vmatprep.subr.bf16.mxu0 0
    %1325 = vmatpush2.bf16.msra.mxu0 %v954
    %1326 = vmatprep.subr.bf16.mxu0 0
    %1327 = vmatpush2.bf16.msra.mxu0 %v953
    %1328 = vmatprep.subr.bf16.mxu0 0
    %1329 = vmatpush2.bf16.msra.mxu0 %v952
    %1330 = vmatprep.mubr.bf16.mxu0 %v238
    %1331 = vmatmul.mubr.bf16.gmra.mxu0 %v237
    %v1332 = vpop.f32.mrf.mxu0
    %v1333 = vadd.f32 %v1236, %v1332
    %v1334 = vpop.f32.mrf.mxu0
    %v1335 = vpop.f32.mrf.mxu0
    %v1336 = vadd.f32 %v1239, %v1335
    %v1337 = vpop.f32.mrf.mxu0
    %1338 = vmatprep.mubr.bf16.mxu0 %v250
    %1339 = vmatmul.mubr.bf16.gmra.mxu0 %v249
    %v1340 = vpop.f32.mrf.mxu0
    %v1341 = vadd.f32 %v1244, %v1340
    %v1342 = vpop.f32.mrf.mxu0
    %v1343 = vpop.f32.mrf.mxu0
    %v1344 = vadd.f32 %v1247, %v1343
    %v1345 = vpop.f32.mrf.mxu0
    %1346 = vmatprep.mubr.bf16.mxu0 %v262
    %1347 = vmatmul.mubr.bf16.gmra.mxu0 %v261
    %v1348 = vpop.f32.mrf.mxu0
    %v1349 = vadd.f32 %v1252, %v1348
    %v1350 = vpop.f32.mrf.mxu0
    %v1351 = vpop.f32.mrf.mxu0
    %v1352 = vadd.f32 %v1255, %v1351
    %v1353 = vpop.f32.mrf.mxu0
    %1354 = vmatprep.mubr.bf16.mxu0 %v274
    %1355 = vmatmul.mubr.bf16.gmra.mxu0 %v273
    %v1356 = vpop.f32.mrf.mxu0
    %v1357 = vadd.f32 %v1260, %v1356
    %v1358 = vpop.f32.mrf.mxu0
    %v1359 = vpop.f32.mrf.mxu0
    %v1360 = vadd.f32 %v1263, %v1359
    %v1361 = vpop.f32.mrf.mxu0
    %1362 = vmatprep.mubr.bf16.mxu0 %v286
    %1363 = vmatmul.mubr.bf16.gmra.mxu0 %v285
    %v1364 = vpop.f32.mrf.mxu0
    %v1365 = vadd.f32 %v1268, %v1364
    %v1366 = vpop.f32.mrf.mxu0
    %v1367 = vpop.f32.mrf.mxu0
    %v1368 = vadd.f32 %v1271, %v1367
    %v1369 = vpop.f32.mrf.mxu0
    %1370 = vmatprep.mubr.bf16.mxu0 %v298
    %1371 = vmatmul.mubr.bf16.gmra.mxu0 %v297
    %v1372 = vpop.f32.mrf.mxu0
    %v1373 = vadd.f32 %v1276, %v1372
    %v1374 = vpop.f32.mrf.mxu0
    %v1375 = vpop.f32.mrf.mxu0
    %v1376 = vadd.f32 %v1279, %v1375
    %v1377 = vpop.f32.mrf.mxu0
    %1378 = vmatprep.mubr.bf16.mxu0 %v310
    %1379 = vmatmul.mubr.bf16.gmra.mxu0 %v309
    %v1380 = vpop.f32.mrf.mxu0
    %v1381 = vadd.f32 %v1284, %v1380
    %v1382 = vpop.f32.mrf.mxu0
    %v1383 = vpop.f32.mrf.mxu0
    %v1384 = vadd.f32 %v1287, %v1383
    %v1385 = vpop.f32.mrf.mxu0
    %1386 = vmatprep.mubr.bf16.mxu0 %v322
    %1387 = vmatmul.mubr.bf16.gmra.mxu0 %v321
    %v1388 = vpop.f32.mrf.mxu0
    %v1389 = vadd.f32 %v1292, %v1388
    %v1390 = vpop.f32.mrf.mxu0
    %v1391 = vpop.f32.mrf.mxu0
    %v1392 = vadd.f32 %v1295, %v1391
    %v1393 = vpop.f32.mrf.mxu0
    %1394 = vdwg.mxu0
    %1395 = vmatprep.subr.bf16.mxu0 0
    %1396 = vmatpush1.bf16.msra.mxu0 %v967
    %1397 = vmatprep.subr.bf16.mxu0 0
    %1398 = vmatpush1.bf16.msra.mxu0 %v966
    %1399 = vmatprep.subr.bf16.mxu0 0
    %1400 = vmatpush1.bf16.msra.mxu0 %v965
    %1401 = vmatprep.subr.bf16.mxu0 0
    %1402 = vmatpush1.bf16.msra.mxu0 %v964
    %1403 = vmatprep.subr.bf16.mxu0 0
    %1404 = vmatpush1.bf16.msra.mxu0 %v963
    %1405 = vmatprep.subr.bf16.mxu0 0
    %1406 = vmatpush1.bf16.msra.mxu0 %v962
    %1407 = vmatprep.subr.bf16.mxu0 0
    %1408 = vmatpush1.bf16.msra.mxu0 %v961
    %1409 = vmatprep.subr.bf16.mxu0 0
    %1410 = vmatpush1.bf16.msra.mxu0 %v960
    %1411 = vmatprep.subr.bf16.mxu0 0
    %1412 = vmatpush2.bf16.msra.mxu0 %v975
    %1413 = vmatprep.subr.bf16.mxu0 0
    %1414 = vmatpush2.bf16.msra.mxu0 %v974
    %1415 = vmatprep.subr.bf16.mxu0 0
    %1416 = vmatpush2.bf16.msra.mxu0 %v973
    %1417 = vmatprep.subr.bf16.mxu0 0
    %1418 = vmatpush2.bf16.msra.mxu0 %v972
    %1419 = vmatprep.subr.bf16.mxu0 0
    %1420 = vmatpush2.bf16.msra.mxu0 %v971
    %1421 = vmatprep.subr.bf16.mxu0 0
    %1422 = vmatpush2.bf16.msra.mxu0 %v970
    %1423 = vmatprep.subr.bf16.mxu0 0
    %1424 = vmatpush2.bf16.msra.mxu0 %v969
    %1425 = vmatprep.subr.bf16.mxu0 0
    %1426 = vmatpush2.bf16.msra.mxu0 %v968
    %1427 = vmatprep.mubr.bf16.mxu0 %v240
    %1428 = vmatmul.mubr.bf16.gmra.mxu0 %v239
    %v1429 = vpop.f32.mrf.mxu0
    %v1430 = vadd.f32 %v1333, %v1429
    %v1431 = vpop.f32.mrf.mxu0
    %v1432 = vpop.f32.mrf.mxu0
    %v1433 = vadd.f32 %v1336, %v1432
    %v1434 = vpop.f32.mrf.mxu0
    %1435 = vmatprep.mubr.bf16.mxu0 %v252
    %1436 = vmatmul.mubr.bf16.gmra.mxu0 %v251
    %v1437 = vpop.f32.mrf.mxu0
    %v1438 = vadd.f32 %v1341, %v1437
    %v1439 = vpop.f32.mrf.mxu0
    %v1440 = vpop.f32.mrf.mxu0
    %v1441 = vadd.f32 %v1344, %v1440
    %v1442 = vpop.f32.mrf.mxu0
    %1443 = vmatprep.mubr.bf16.mxu0 %v264
    %1444 = vmatmul.mubr.bf16.gmra.mxu0 %v263
    %v1445 = vpop.f32.mrf.mxu0
    %v1446 = vadd.f32 %v1349, %v1445
    %v1447 = vpop.f32.mrf.mxu0
    %v1448 = vpop.f32.mrf.mxu0
    %v1449 = vadd.f32 %v1352, %v1448
    %v1450 = vpop.f32.mrf.mxu0
    %1451 = vmatprep.mubr.bf16.mxu0 %v276
    %1452 = vmatmul.mubr.bf16.gmra.mxu0 %v275
    %v1453 = vpop.f32.mrf.mxu0
    %v1454 = vadd.f32 %v1357, %v1453
    %v1455 = vpop.f32.mrf.mxu0
    %v1456 = vpop.f32.mrf.mxu0
    %v1457 = vadd.f32 %v1360, %v1456
    %v1458 = vpop.f32.mrf.mxu0
    %1459 = vmatprep.mubr.bf16.mxu0 %v288
    %1460 = vmatmul.mubr.bf16.gmra.mxu0 %v287
    %v1461 = vpop.f32.mrf.mxu0
    %v1462 = vadd.f32 %v1365, %v1461
    %v1463 = vpop.f32.mrf.mxu0
    %v1464 = vpop.f32.mrf.mxu0
    %v1465 = vadd.f32 %v1368, %v1464
    %v1466 = vpop.f32.mrf.mxu0
    %1467 = vmatprep.mubr.bf16.mxu0 %v300
    %1468 = vmatmul.mubr.bf16.gmra.mxu0 %v299
    %v1469 = vpop.f32.mrf.mxu0
    %v1470 = vadd.f32 %v1373, %v1469
    %v1471 = vpop.f32.mrf.mxu0
    %v1472 = vpop.f32.mrf.mxu0
    %v1473 = vadd.f32 %v1376, %v1472
    %v1474 = vpop.f32.mrf.mxu0
    %1475 = vmatprep.mubr.bf16.mxu0 %v312
    %1476 = vmatmul.mubr.bf16.gmra.mxu0 %v311
    %v1477 = vpop.f32.mrf.mxu0
    %v1478 = vadd.f32 %v1381, %v1477
    %v1479 = vpop.f32.mrf.mxu0
    %v1480 = vpop.f32.mrf.mxu0
    %v1481 = vadd.f32 %v1384, %v1480
    %v1482 = vpop.f32.mrf.mxu0
    %1483 = vmatprep.mubr.bf16.mxu0 %v324
    %1484 = vmatmul.mubr.bf16.gmra.mxu0 %v323
    %v1485 = vpop.f32.mrf.mxu0
    %v1486 = vadd.f32 %v1389, %v1485
    %v1487 = vpop.f32.mrf.mxu0
    %v1488 = vpop.f32.mrf.mxu0
    %v1489 = vadd.f32 %v1392, %v1488
    %v1490 = vpop.f32.mrf.mxu0
    %1491 = vdwg.mxu0
    %1492 = vmatprep.subr.bf16.mxu0 0
    %1493 = vmatpush1.bf16.msra.mxu0 %v983
    %1494 = vmatprep.subr.bf16.mxu0 0
    %1495 = vmatpush1.bf16.msra.mxu0 %v982
    %1496 = vmatprep.subr.bf16.mxu0 0
    %1497 = vmatpush1.bf16.msra.mxu0 %v981
    %1498 = vmatprep.subr.bf16.mxu0 0
    %1499 = vmatpush1.bf16.msra.mxu0 %v980
    %1500 = vmatprep.subr.bf16.mxu0 0
    %1501 = vmatpush1.bf16.msra.mxu0 %v979
    %1502 = vmatprep.subr.bf16.mxu0 0
    %1503 = vmatpush1.bf16.msra.mxu0 %v978
    %1504 = vmatprep.subr.bf16.mxu0 0
    %1505 = vmatpush1.bf16.msra.mxu0 %v977
    %1506 = vmatprep.subr.bf16.mxu0 0
    %1507 = vmatpush1.bf16.msra.mxu0 %v976
    %1508 = vmatprep.subr.bf16.mxu0 0
    %1509 = vmatpush2.bf16.msra.mxu0 %v991
    %1510 = vmatprep.subr.bf16.mxu0 0
    %1511 = vmatpush2.bf16.msra.mxu0 %v990
    %1512 = vmatprep.subr.bf16.mxu0 0
    %1513 = vmatpush2.bf16.msra.mxu0 %v989
    %1514 = vmatprep.subr.bf16.mxu0 0
    %1515 = vmatpush2.bf16.msra.mxu0 %v988
    %1516 = vmatprep.subr.bf16.mxu0 0
    %1517 = vmatpush2.bf16.msra.mxu0 %v987
    %1518 = vmatprep.subr.bf16.mxu0 0
    %1519 = vmatpush2.bf16.msra.mxu0 %v986
    %1520 = vmatprep.subr.bf16.mxu0 0
    %1521 = vmatpush2.bf16.msra.mxu0 %v985
    %1522 = vmatprep.subr.bf16.mxu0 0
    %1523 = vmatpush2.bf16.msra.mxu0 %v984
    %1524 = vmatprep.mubr.bf16.mxu0 %v242
    %1525 = vmatmul.mubr.bf16.gmra.mxu0 %v241
    %v1526 = vpop.f32.mrf.mxu0
    %v1527 = vadd.f32 %v1430, %v1526
    %v1528 = vpop.f32.mrf.mxu0
    %v1529 = vpop.f32.mrf.mxu0
    %v1530 = vadd.f32 %v1433, %v1529
    %v1531 = vpop.f32.mrf.mxu0
    %1532 = vmatprep.mubr.bf16.mxu0 %v254
    %1533 = vmatmul.mubr.bf16.gmra.mxu0 %v253
    %v1534 = vpop.f32.mrf.mxu0
    %v1535 = vadd.f32 %v1438, %v1534
    %v1536 = vpop.f32.mrf.mxu0
    %v1537 = vpop.f32.mrf.mxu0
    %v1538 = vadd.f32 %v1441, %v1537
    %v1539 = vpop.f32.mrf.mxu0
    %1540 = vmatprep.mubr.bf16.mxu0 %v266
    %1541 = vmatmul.mubr.bf16.gmra.mxu0 %v265
    %v1542 = vpop.f32.mrf.mxu0
    %v1543 = vadd.f32 %v1446, %v1542
    %v1544 = vpop.f32.mrf.mxu0
    %v1545 = vpop.f32.mrf.mxu0
    %v1546 = vadd.f32 %v1449, %v1545
    %v1547 = vpop.f32.mrf.mxu0
    %1548 = vmatprep.mubr.bf16.mxu0 %v278
    %1549 = vmatmul.mubr.bf16.gmra.mxu0 %v277
    %v1550 = vpop.f32.mrf.mxu0
    %v1551 = vadd.f32 %v1454, %v1550
    %v1552 = vpop.f32.mrf.mxu0
    %v1553 = vpop.f32.mrf.mxu0
    %v1554 = vadd.f32 %v1457, %v1553
    %v1555 = vpop.f32.mrf.mxu0
    %1556 = vmatprep.mubr.bf16.mxu0 %v290
    %1557 = vmatmul.mubr.bf16.gmra.mxu0 %v289
    %v1558 = vpop.f32.mrf.mxu0
    %v1559 = vadd.f32 %v1462, %v1558
    %v1560 = vpop.f32.mrf.mxu0
    %v1561 = vpop.f32.mrf.mxu0
    %v1562 = vadd.f32 %v1465, %v1561
    %v1563 = vpop.f32.mrf.mxu0
    %1564 = vmatprep.mubr.bf16.mxu0 %v302
    %1565 = vmatmul.mubr.bf16.gmra.mxu0 %v301
    %v1566 = vpop.f32.mrf.mxu0
    %v1567 = vadd.f32 %v1470, %v1566
    %v1568 = vpop.f32.mrf.mxu0
    %v1569 = vpop.f32.mrf.mxu0
    %v1570 = vadd.f32 %v1473, %v1569
    %v1571 = vpop.f32.mrf.mxu0
    %1572 = vmatprep.mubr.bf16.mxu0 %v314
    %1573 = vmatmul.mubr.bf16.gmra.mxu0 %v313
    %v1574 = vpop.f32.mrf.mxu0
    %v1575 = vadd.f32 %v1478, %v1574
    %v1576 = vpop.f32.mrf.mxu0
    %v1577 = vpop.f32.mrf.mxu0
    %v1578 = vadd.f32 %v1481, %v1577
    %v1579 = vpop.f32.mrf.mxu0
    %1580 = vmatprep.mubr.bf16.mxu0 %v326
    %1581 = vmatmul.mubr.bf16.gmra.mxu0 %v325
    %v1582 = vpop.f32.mrf.mxu0
    %v1583 = vadd.f32 %v1486, %v1582
    %v1584 = vpop.f32.mrf.mxu0
    %v1585 = vpop.f32.mrf.mxu0
    %v1586 = vadd.f32 %v1489, %v1585
    %v1587 = vpop.f32.mrf.mxu0
    %1588 = vdwg.mxu0
    %1589 = vmatprep.subr.bf16.mxu0 0
    %1590 = vmatpush1.bf16.msra.mxu0 %v999
    %1591 = vmatprep.subr.bf16.mxu0 0
    %1592 = vmatpush1.bf16.msra.mxu0 %v998
    %1593 = vmatprep.subr.bf16.mxu0 0
    %1594 = vmatpush1.bf16.msra.mxu0 %v997
    %1595 = vmatprep.subr.bf16.mxu0 0
    %1596 = vmatpush1.bf16.msra.mxu0 %v996
    %1597 = vmatprep.subr.bf16.mxu0 0
    %1598 = vmatpush1.bf16.msra.mxu0 %v995
    %1599 = vmatprep.subr.bf16.mxu0 0
    %1600 = vmatpush1.bf16.msra.mxu0 %v994
    %1601 = vmatprep.subr.bf16.mxu0 0
    %1602 = vmatpush1.bf16.msra.mxu0 %v993
    %1603 = vmatprep.subr.bf16.mxu0 0
    %1604 = vmatpush1.bf16.msra.mxu0 %v992
    %1605 = vmatprep.subr.bf16.mxu0 0
    %1606 = vmatpush2.bf16.msra.mxu0 %v1007
    %1607 = vmatprep.subr.bf16.mxu0 0
    %1608 = vmatpush2.bf16.msra.mxu0 %v1006
    %1609 = vmatprep.subr.bf16.mxu0 0
    %1610 = vmatpush2.bf16.msra.mxu0 %v1005
    %1611 = vmatprep.subr.bf16.mxu0 0
    %1612 = vmatpush2.bf16.msra.mxu0 %v1004
    %1613 = vmatprep.subr.bf16.mxu0 0
    %1614 = vmatpush2.bf16.msra.mxu0 %v1003
    %1615 = vmatprep.subr.bf16.mxu0 0
    %1616 = vmatpush2.bf16.msra.mxu0 %v1002
    %1617 = vmatprep.subr.bf16.mxu0 0
    %1618 = vmatpush2.bf16.msra.mxu0 %v1001
    %1619 = vmatprep.subr.bf16.mxu0 0
    %1620 = vmatpush2.bf16.msra.mxu0 %v1000
    %1621 = vmatprep.mubr.bf16.mxu0 %v244
    %1622 = vmatmul.mubr.bf16.gmra.mxu0 %v243
    %v1623 = vpop.f32.mrf.mxu0
    %v1624 = vadd.f32 %v1527, %v1623
    %v1625 = vpop.f32.mrf.mxu0
    %v1626 = vpop.f32.mrf.mxu0
    %v1627 = vadd.f32 %v1530, %v1626
    %v1628 = vpop.f32.mrf.mxu0
    %1629 = vmatprep.mubr.bf16.mxu0 %v256
    %1630 = vmatmul.mubr.bf16.gmra.mxu0 %v255
    %v1631 = vpop.f32.mrf.mxu0
    %v1632 = vadd.f32 %v1535, %v1631
    %v1633 = vpop.f32.mrf.mxu0
    %v1634 = vpop.f32.mrf.mxu0
    %v1635 = vadd.f32 %v1538, %v1634
    %v1636 = vpop.f32.mrf.mxu0
    %1637 = vmatprep.mubr.bf16.mxu0 %v268
    %1638 = vmatmul.mubr.bf16.gmra.mxu0 %v267
    %v1639 = vpop.f32.mrf.mxu0
    %v1640 = vadd.f32 %v1543, %v1639
    %v1641 = vpop.f32.mrf.mxu0
    %v1642 = vpop.f32.mrf.mxu0
    %v1643 = vadd.f32 %v1546, %v1642
    %v1644 = vpop.f32.mrf.mxu0
    %1645 = vmatprep.mubr.bf16.mxu0 %v280
    %1646 = vmatmul.mubr.bf16.gmra.mxu0 %v279
    %v1647 = vpop.f32.mrf.mxu0
    %v1648 = vadd.f32 %v1551, %v1647
    %v1649 = vpop.f32.mrf.mxu0
    %v1650 = vpop.f32.mrf.mxu0
    %v1651 = vadd.f32 %v1554, %v1650
    %v1652 = vpop.f32.mrf.mxu0
    %1653 = vmatprep.mubr.bf16.mxu0 %v292
    %1654 = vmatmul.mubr.bf16.gmra.mxu0 %v291
    %v1655 = vpop.f32.mrf.mxu0
    %v1656 = vadd.f32 %v1559, %v1655
    %v1657 = vpop.f32.mrf.mxu0
    %v1658 = vpop.f32.mrf.mxu0
    %v1659 = vadd.f32 %v1562, %v1658
    %v1660 = vpop.f32.mrf.mxu0
    %1661 = vmatprep.mubr.bf16.mxu0 %v304
    %1662 = vmatmul.mubr.bf16.gmra.mxu0 %v303
    %v1663 = vpop.f32.mrf.mxu0
    %v1664 = vadd.f32 %v1567, %v1663
    %v1665 = vpop.f32.mrf.mxu0
    %v1666 = vpop.f32.mrf.mxu0
    %v1667 = vadd.f32 %v1570, %v1666
    %v1668 = vpop.f32.mrf.mxu0
    %1669 = vmatprep.mubr.bf16.mxu0 %v316
    %1670 = vmatmul.mubr.bf16.gmra.mxu0 %v315
    %v1671 = vpop.f32.mrf.mxu0
    %v1672 = vadd.f32 %v1575, %v1671
    %v1673 = vpop.f32.mrf.mxu0
    %v1674 = vpop.f32.mrf.mxu0
    %v1675 = vadd.f32 %v1578, %v1674
    %v1676 = vpop.f32.mrf.mxu0
    %1677 = vmatprep.mubr.bf16.mxu0 %v328
    %1678 = vmatmul.mubr.bf16.gmra.mxu0 %v327
    %v1679 = vpop.f32.mrf.mxu0
    %v1680 = vadd.f32 %v1583, %v1679
    %v1681 = vpop.f32.mrf.mxu0
    %v1682 = vpop.f32.mrf.mxu0
    %v1683 = vadd.f32 %v1586, %v1682
    %v1684 = vpop.f32.mrf.mxu0
    %1685 = vdwg.mxu0
    %v1686 = vmax.f32 %v1624, 0.0
    %v1687 = vmax.f32 %v1627, 0.0
    %v1688 = vmax.f32 %v1632, 0.0
    %v1689 = vmax.f32 %v1635, 0.0
    %v1690 = vmax.f32 %v1640, 0.0
    %v1691 = vmax.f32 %v1643, 0.0
    %v1692 = vmax.f32 %v1648, 0.0
    %v1693 = vmax.f32 %v1651, 0.0
    %v1694 = vmax.f32 %v1656, 0.0
    %v1695 = vmax.f32 %v1659, 0.0
    %v1696 = vmax.f32 %v1664, 0.0
    %v1697 = vmax.f32 %v1667, 0.0
    %v1698 = vmax.f32 %v1672, 0.0
    %v1699 = vmax.f32 %v1675, 0.0
    %v1700 = vmax.f32 %v1680, 0.0
    %v1701 = vmax.f32 %v1683, 0.0
    %v1702 = vpack.c.bf16 %v1687, %v1686
    %v1703 = vpack.c.bf16 %v1689, %v1688
    %v1704 = vpack.c.bf16 %v1691, %v1690
    %v1705 = vpack.c.bf16 %v1693, %v1692
    %v1706 = vpack.c.bf16 %v1695, %v1694
    %v1707 = vpack.c.bf16 %v1697, %v1696
    %v1708 = vpack.c.bf16 %v1699, %v1698
    %v1709 = vpack.c.bf16 %v1701, %v1700
    %v1710 = vld [vmem:[%s3] sm:$0xf]
    %v1711 = vld [vmem:[%s3 + $0x4] sm:$0xf]
    %v1712 = vld [vmem:[%s3 + $0x8] sm:$0xf]
    %v1713 = vld [vmem:[%s3 + $0xc] sm:$0xf]
    %v1714 = vld [vmem:[%s3 + $0x10] sm:$0xf]
    %v1715 = vld [vmem:[%s3 + $0x14] sm:$0xf]
    %v1716 = vld [vmem:[%s3 + $0x18] sm:$0xf]
    %v1717 = vld [vmem:[%s3 + $0x1c] sm:$0xf]
    %v1718 = vld [vmem:[%s3 + $0x20] sm:$0xf]
    %v1719 = vld [vmem:[%s3 + $0x24] sm:$0xf]
    %v1720 = vld [vmem:[%s3 + $0x28] sm:$0xf]
    %v1721 = vld [vmem:[%s3 + $0x2c] sm:$0xf]
    %v1722 = vld [vmem:[%s3 + $0x30] sm:$0xf]
    %v1723 = vld [vmem:[%s3 + $0x34] sm:$0xf]
    %v1724 = vld [vmem:[%s3 + $0x38] sm:$0xf]
    %v1725 = vld [vmem:[%s3 + $0x3c] sm:$0xf]
    %v1726 = vld [vmem:[%s4] sm:$0x1]
    %v1728 = vlaneseq
    %v1729 = vshrl.u32 %v1728, 7
    %v1730 = vsub.s32 0, %v1729
    %v1731 = vrot.slane %v1726, %v1730
    %v1749 = vunpack.c.l.b16 %v1710
    %v1750 = vunpack.c.l.b16 %v1711
    %v1751 = vunpack.c.l.b16 %v1712
    %v1752 = vunpack.c.l.b16 %v1713
    %v1753 = vunpack.c.l.b16 %v1714
    %v1754 = vunpack.c.l.b16 %v1715
    %v1755 = vunpack.c.l.b16 %v1716
    %v1756 = vunpack.c.l.b16 %v1717
    %v1757 = vunpack.c.l.b16 %v1718
    %v1758 = vunpack.c.l.b16 %v1719
    %v1759 = vunpack.c.l.b16 %v1720
    %v1760 = vunpack.c.l.b16 %v1721
    %v1761 = vunpack.c.l.b16 %v1722
    %v1762 = vunpack.c.l.b16 %v1723
    %v1763 = vunpack.c.l.b16 %v1724
    %v1764 = vunpack.c.l.b16 %v1725
    %v1765 = vpack.c.b16 %v1750, %v1749
    %v1766 = vpack.c.b16 %v1752, %v1751
    %v1767 = vpack.c.b16 %v1754, %v1753
    %v1768 = vpack.c.b16 %v1756, %v1755
    %v1769 = vpack.c.b16 %v1758, %v1757
    %v1770 = vpack.c.b16 %v1760, %v1759
    %v1771 = vpack.c.b16 %v1762, %v1761
    %v1772 = vpack.c.b16 %v1764, %v1763
    %1781 = vmatprep.subr.bf16.mxu0 0
    %1782 = vmatpush1.bf16.msra.mxu0 %v1772
    %1783 = vmatprep.subr.bf16.mxu0 0
    %1784 = vmatpush1.bf16.msra.mxu0 %v1771
    %1785 = vmatprep.subr.bf16.mxu0 0
    %1786 = vmatpush1.bf16.msra.mxu0 %v1770
    %1787 = vmatprep.subr.bf16.mxu0 0
    %1788 = vmatpush1.bf16.msra.mxu0 %v1769
    %1789 = vmatprep.subr.bf16.mxu0 0
    %1790 = vmatpush1.bf16.msra.mxu0 %v1768
    %1791 = vmatprep.subr.bf16.mxu0 0
    %1792 = vmatpush1.bf16.msra.mxu0 %v1767
    %1793 = vmatprep.subr.bf16.mxu0 0
    %1794 = vmatpush1.bf16.msra.mxu0 %v1766
    %1795 = vmatprep.subr.bf16.mxu0 0
    %1796 = vmatpush1.bf16.msra.mxu0 %v1765
    %1797 = vmatprep.subr.bf16.mxu0 0
    %1798 = vmatpush2.bf16.msra.mxu0 0
    %1799 = vmatprep.subr.bf16.mxu0 0
    %1800 = vmatpush2.bf16.msra.mxu0 0
    %1801 = vmatprep.subr.bf16.mxu0 0
    %1802 = vmatpush2.bf16.msra.mxu0 0
    %1803 = vmatprep.subr.bf16.mxu0 0
    %1804 = vmatpush2.bf16.msra.mxu0 0
    %1805 = vmatprep.subr.bf16.mxu0 0
    %1806 = vmatpush2.bf16.msra.mxu0 0
    %1807 = vmatprep.subr.bf16.mxu0 0
    %1808 = vmatpush2.bf16.msra.mxu0 0
    %1809 = vmatprep.subr.bf16.mxu0 0
    %1810 = vmatpush2.bf16.msra.mxu0 0
    %1811 = vmatprep.subr.bf16.mxu0 0
    %1812 = vmatpush2.bf16.msra.mxu0 0
    %1813 = vmatprep.mubr.bf16.mxu0 0
    %1814 = vmatmul.mubr.bf16.gmra.mxu0 %v1702
    %v1815 = vpop.f32.mrf.mxu0
    %v1816 = vadd.f32 %v1731, %v1815
    %v1817 = vpop.f32.mrf.mxu0
    %v1818 = vpop.f32.mrf.mxu0
    %v1819 = vadd.f32 %v1731, %v1818
    %v1820 = vpop.f32.mrf.mxu0
    %1821 = vmatprep.mubr.bf16.mxu0 0
    %1822 = vmatmul.mubr.bf16.gmra.mxu0 %v1703
    %v1823 = vpop.f32.mrf.mxu0
    %v1824 = vadd.f32 %v1731, %v1823
    %v1825 = vpop.f32.mrf.mxu0
    %v1826 = vpop.f32.mrf.mxu0
    %v1827 = vadd.f32 %v1731, %v1826
    %v1828 = vpop.f32.mrf.mxu0
    %1829 = vmatprep.mubr.bf16.mxu0 0
    %1830 = vmatmul.mubr.bf16.gmra.mxu0 %v1704
    %v1831 = vpop.f32.mrf.mxu0
    %v1832 = vadd.f32 %v1731, %v1831
    %v1833 = vpop.f32.mrf.mxu0
    %v1834 = vpop.f32.mrf.mxu0
    %v1835 = vadd.f32 %v1731, %v1834
    %v1836 = vpop.f32.mrf.mxu0
    %1837 = vmatprep.mubr.bf16.mxu0 0
    %1838 = vmatmul.mubr.bf16.gmra.mxu0 %v1705
    %v1839 = vpop.f32.mrf.mxu0
    %v1840 = vadd.f32 %v1731, %v1839
    %v1841 = vpop.f32.mrf.mxu0
    %v1842 = vpop.f32.mrf.mxu0
    %v1843 = vadd.f32 %v1731, %v1842
    %v1844 = vpop.f32.mrf.mxu0
    %1845 = vmatprep.mubr.bf16.mxu0 0
    %1846 = vmatmul.mubr.bf16.gmra.mxu0 %v1706
    %v1847 = vpop.f32.mrf.mxu0
    %v1848 = vadd.f32 %v1731, %v1847
    %v1849 = vpop.f32.mrf.mxu0
    %v1850 = vpop.f32.mrf.mxu0
    %v1851 = vadd.f32 %v1731, %v1850
    %v1852 = vpop.f32.mrf.mxu0
    %1853 = vmatprep.mubr.bf16.mxu0 0
    %1854 = vmatmul.mubr.bf16.gmra.mxu0 %v1707
    %v1855 = vpop.f32.mrf.mxu0
    %v1856 = vadd.f32 %v1731, %v1855
    %v1857 = vpop.f32.mrf.mxu0
    %v1858 = vpop.f32.mrf.mxu0
    %v1859 = vadd.f32 %v1731, %v1858
    %v1860 = vpop.f32.mrf.mxu0
    %1861 = vmatprep.mubr.bf16.mxu0 0
    %1862 = vmatmul.mubr.bf16.gmra.mxu0 %v1708
    %v1863 = vpop.f32.mrf.mxu0
    %v1864 = vadd.f32 %v1731, %v1863
    %v1865 = vpop.f32.mrf.mxu0
    %v1866 = vpop.f32.mrf.mxu0
    %v1867 = vadd.f32 %v1731, %v1866
    %v1868 = vpop.f32.mrf.mxu0
    %1869 = vmatprep.mubr.bf16.mxu0 0
    %1870 = vmatmul.mubr.bf16.gmra.mxu0 %v1709
    %v1871 = vpop.f32.mrf.mxu0
    %v1872 = vadd.f32 %v1731, %v1871
    %v1873 = vpop.f32.mrf.mxu0
    %v1874 = vpop.f32.mrf.mxu0
    %v1875 = vadd.f32 %v1731, %v1874
    %v1876 = vpop.f32.mrf.mxu0
    %1877 = vdwg.mxu0
    %v1878 = vmax.f32 %v1816, 0.0
    %v1879 = vmax.f32 %v1819, 0.0
    %v1880 = vmax.f32 %v1824, 0.0
    %v1881 = vmax.f32 %v1827, 0.0
    %v1882 = vmax.f32 %v1832, 0.0
    %v1883 = vmax.f32 %v1835, 0.0
    %v1884 = vmax.f32 %v1840, 0.0
    %v1885 = vmax.f32 %v1843, 0.0
    %v1886 = vmax.f32 %v1848, 0.0
    %v1887 = vmax.f32 %v1851, 0.0
    %v1888 = vmax.f32 %v1856, 0.0
    %v1889 = vmax.f32 %v1859, 0.0
    %v1890 = vmax.f32 %v1864, 0.0
    %v1891 = vmax.f32 %v1867, 0.0
    %v1892 = vmax.f32 %v1872, 0.0
    %v1893 = vmax.f32 %v1875, 0.0
    %v1894 = vpack.c.bf16 %v1879, %v1878
    %v1895 = vpack.c.bf16 %v1881, %v1880
    %v1896 = vpack.c.bf16 %v1883, %v1882
    %v1897 = vpack.c.bf16 %v1885, %v1884
    %v1898 = vpack.c.bf16 %v1887, %v1886
    %v1899 = vpack.c.bf16 %v1889, %v1888
    %v1900 = vpack.c.bf16 %v1891, %v1890
    %v1901 = vpack.c.bf16 %v1893, %v1892
    %v1902 = vld [vmem:[%s5] sm:$0xf]
    %v1903 = vld [vmem:[%s5 + $0x4] sm:$0xf]
    %v1904 = vld [vmem:[%s5 + $0x8] sm:$0xf]
    %v1905 = vld [vmem:[%s5 + $0xc] sm:$0xf]
    %v1906 = vld [vmem:[%s6] sm:$0x1]
    %v1908 = vlaneseq
    %v1909 = vshrl.u32 %v1908, 7
    %v1910 = vsub.s32 0, %v1909
    %v1911 = vrot.slane %v1906, %v1910
    %v1917 = vunpack.c.l.b16 %v1902
    %v1918 = vunpack.c.l.b16 %v1903
    %v1919 = vunpack.c.l.b16 %v1904
    %v1920 = vunpack.c.l.b16 %v1905
    %v1921 = vpack.c.b16 %v1918, %v1917
    %v1922 = vpack.c.b16 %v1920, %v1919
    %vm1925 = vcmask 261120
    %v1927 = vsel %vm1925, %v1894, 0
    %v1930 = vsel %vm1925, %v1895, 0
    %v1933 = vsel %vm1925, %v1896, 0
    %v1936 = vsel %vm1925, %v1897, 0
    %v1939 = vsel %vm1925, %v1898, 0
    %v1942 = vsel %vm1925, %v1899, 0
    %v1945 = vsel %vm1925, %v1900, 0
    %v1948 = vsel %vm1925, %v1901, 0
    %1950 = vmatprep.subr.bf16.mxu0 0
    %1951 = vmatpush1.bf16.msra.mxu0 0
    %1952 = vmatprep.subr.bf16.mxu0 0
    %1953 = vmatpush1.bf16.msra.mxu0 0
    %1954 = vmatprep.subr.bf16.mxu0 0
    %1955 = vmatpush1.bf16.msra.mxu0 0
    %1956 = vmatprep.subr.bf16.mxu0 0
    %1957 = vmatpush1.bf16.msra.mxu0 0
    %1958 = vmatprep.subr.bf16.mxu0 0
    %1959 = vmatpush1.bf16.msra.mxu0 0
    %1960 = vmatprep.subr.bf16.mxu0 0
    %1961 = vmatpush1.bf16.msra.mxu0 0
    %1962 = vmatprep.subr.bf16.mxu0 0
    %1963 = vmatpush1.bf16.msra.mxu0 %v1922
    %1964 = vmatprep.subr.bf16.mxu0 0
    %1965 = vmatpush1.bf16.msra.mxu0 %v1921
    %1966 = vmatprep.subr.bf16.mxu0 0
    %1967 = vmatpush2.bf16.msra.mxu0 0
    %1968 = vmatprep.subr.bf16.mxu0 0
    %1969 = vmatpush2.bf16.msra.mxu0 0
    %1970 = vmatprep.subr.bf16.mxu0 0
    %1971 = vmatpush2.bf16.msra.mxu0 0
    %1972 = vmatprep.subr.bf16.mxu0 0
    %1973 = vmatpush2.bf16.msra.mxu0 0
    %1974 = vmatprep.subr.bf16.mxu0 0
    %1975 = vmatpush2.bf16.msra.mxu0 0
    %1976 = vmatprep.subr.bf16.mxu0 0
    %1977 = vmatpush2.bf16.msra.mxu0 0
    %1978 = vmatprep.subr.bf16.mxu0 0
    %1979 = vmatpush2.bf16.msra.mxu0 0
    %1980 = vmatprep.subr.bf16.mxu0 0
    %1981 = vmatpush2.bf16.msra.mxu0 0
    %1982 = vmatprep.mubr.bf16.mxu0 0
    %1983 = vmatmul.mubr.bf16.gmra.mxu0 %v1927
    %v1984 = vpop.f32.mrf.mxu0
    %v1985 = vadd.f32 %v1911, %v1984
    %v1986 = vpop.f32.mrf.mxu0
    %v1987 = vpop.f32.mrf.mxu0
    %v1988 = vadd.f32 %v1911, %v1987
    %v1989 = vpop.f32.mrf.mxu0
    %1990 = vmatprep.mubr.bf16.mxu0 0
    %1991 = vmatmul.mubr.bf16.gmra.mxu0 %v1930
    %v1992 = vpop.f32.mrf.mxu0
    %v1993 = vadd.f32 %v1911, %v1992
    %v1994 = vpop.f32.mrf.mxu0
    %v1995 = vpop.f32.mrf.mxu0
    %v1996 = vadd.f32 %v1911, %v1995
    %v1997 = vpop.f32.mrf.mxu0
    %1998 = vmatprep.mubr.bf16.mxu0 0
    %1999 = vmatmul.mubr.bf16.gmra.mxu0 %v1933
    %v2000 = vpop.f32.mrf.mxu0
    %v2001 = vadd.f32 %v1911, %v2000
    %v2002 = vpop.f32.mrf.mxu0
    %v2003 = vpop.f32.mrf.mxu0
    %v2004 = vadd.f32 %v1911, %v2003
    %v2005 = vpop.f32.mrf.mxu0
    %2006 = vmatprep.mubr.bf16.mxu0 0
    %2007 = vmatmul.mubr.bf16.gmra.mxu0 %v1936
    %v2008 = vpop.f32.mrf.mxu0
    %v2009 = vadd.f32 %v1911, %v2008
    %v2010 = vpop.f32.mrf.mxu0
    %v2011 = vpop.f32.mrf.mxu0
    %v2012 = vadd.f32 %v1911, %v2011
    %v2013 = vpop.f32.mrf.mxu0
    %2014 = vmatprep.mubr.bf16.mxu0 0
    %2015 = vmatmul.mubr.bf16.gmra.mxu0 %v1939
    %v2016 = vpop.f32.mrf.mxu0
    %v2017 = vadd.f32 %v1911, %v2016
    %v2018 = vpop.f32.mrf.mxu0
    %v2019 = vpop.f32.mrf.mxu0
    %v2020 = vadd.f32 %v1911, %v2019
    %v2021 = vpop.f32.mrf.mxu0
    %2022 = vmatprep.mubr.bf16.mxu0 0
    %2023 = vmatmul.mubr.bf16.gmra.mxu0 %v1942
    %v2024 = vpop.f32.mrf.mxu0
    %v2025 = vadd.f32 %v1911, %v2024
    %v2026 = vpop.f32.mrf.mxu0
    %v2027 = vpop.f32.mrf.mxu0
    %v2028 = vadd.f32 %v1911, %v2027
    %v2029 = vpop.f32.mrf.mxu0
    %2030 = vmatprep.mubr.bf16.mxu0 0
    %2031 = vmatmul.mubr.bf16.gmra.mxu0 %v1945
    %v2032 = vpop.f32.mrf.mxu0
    %v2033 = vadd.f32 %v1911, %v2032
    %v2034 = vpop.f32.mrf.mxu0
    %v2035 = vpop.f32.mrf.mxu0
    %v2036 = vadd.f32 %v1911, %v2035
    %v2037 = vpop.f32.mrf.mxu0
    %2038 = vmatprep.mubr.bf16.mxu0 0
    %2039 = vmatmul.mubr.bf16.gmra.mxu0 %v1948
    %v2040 = vpop.f32.mrf.mxu0
    %v2041 = vadd.f32 %v1911, %v2040
    %v2042 = vpop.f32.mrf.mxu0
    %v2043 = vpop.f32.mrf.mxu0
    %v2044 = vadd.f32 %v1911, %v2043
    %v2045 = vpop.f32.mrf.mxu0
    %2046 = vdwg.mxu0
    %vm2047 = vcmask 15360
    %2048 = vst.msk [vmem:[#allocation4] sm:$0xff] %vm2047, %v1985
    %2049 = vst.msk [vmem:[#allocation4 + $0x8] sm:$0xff] %vm2047, %v1988
    %2050 = vst.msk [vmem:[#allocation4 + $0x10] sm:$0xff] %vm2047, %v1993
    %2051 = vst.msk [vmem:[#allocation4 + $0x18] sm:$0xff] %vm2047, %v1996
    %2052 = vst.msk [vmem:[#allocation4 + $0x20] sm:$0xff] %vm2047, %v2001
    %2053 = vst.msk [vmem:[#allocation4 + $0x28] sm:$0xff] %vm2047, %v2004
    %2054 = vst.msk [vmem:[#allocation4 + $0x30] sm:$0xff] %vm2047, %v2009
    %2055 = vst.msk [vmem:[#allocation4 + $0x38] sm:$0xff] %vm2047, %v2012
    %2056 = vst.msk [vmem:[#allocation4 + $0x40] sm:$0xff] %vm2047, %v2017
    %2057 = vst.msk [vmem:[#allocation4 + $0x48] sm:$0xff] %vm2047, %v2020
    %2058 = vst.msk [vmem:[#allocation4 + $0x50] sm:$0xff] %vm2047, %v2025
    %2059 = vst.msk [vmem:[#allocation4 + $0x58] sm:$0xff] %vm2047, %v2028
    %2060 = vst.msk [vmem:[#allocation4 + $0x60] sm:$0xff] %vm2047, %v2033
    %2061 = vst.msk [vmem:[#allocation4 + $0x68] sm:$0xff] %vm2047, %v2036
    %2062 = vst.msk [vmem:[#allocation4 + $0x70] sm:$0xff] %vm2047, %v2041
    %2063 = vst.msk [vmem:[#allocation4 + $0x78] sm:$0xff] %vm2047, %v2044
    // Predicated region
    $region34: #{tpu_custom_call.1} parent=1 // pred_check
      _
    $region35: #{tpu_custom_call.1} parent=1 // pred_check_branch
      %2065 = sbr.rel (0) target = $region37
    $region36: #{tpu_custom_call.1} parent=1 // pred_region
      // Predicated region
      $region38: #{tpu_custom_call.1} parent=36 // pred_check
        _
      $region39: #{tpu_custom_call.1} parent=36 // pred_check_branch
        %2067 = sbr.rel (0) target = $region41
      $region40: #{tpu_custom_call.1} parent=36 // pred_region
        // Predicated region
        $region42: #{tpu_custom_call.1} parent=40 // pred_check
          _
        $region43: #{tpu_custom_call.1} parent=40 // pred_check_branch
          %2069 = sbr.rel (0) target = $region45
        $region44: #{tpu_custom_call.1} parent=40 // pred_region
          // Predicated region
          $region57: #{tpu_custom_call.1} parent=44 // pred_check
            _
          $region58: #{tpu_custom_call.1} parent=44 // pred_check_branch
            %2085 = sbr.rel (0) target = $region60
          $region59: #{tpu_custom_call.1} parent=44 // pred_region
            loop: start=0, step=1, limit=1
            $region61: #{tpu_custom_call.1} parent=59 // loop_pre_header
              _
            $region62: #{tpu_custom_call.1} parent=59 // loop_header
              %s2087 = sphi 0, %s2091
              %p2088 = scmp.ge.s32.totalorder %s2087, 1
              %s2092 = sphi [#allocation4], [#allocation4]
              %s2093 = sphi %s7, %s7
            $region63: #{tpu_custom_call.1} parent=59 // loop_header_branch
              %2090 = sbr.rel (%p2088) target = $region67
            $region64: #{tpu_custom_call.1} parent=59 // loop_body
              %v2094 = vld [vmem:[%s2092] sm:$0xff]
              %2095 = vst [vmem:[%s2093] sm:$0xff] %v2094
            $region65: #{tpu_custom_call.1} parent=59 // loop_footer
              %s2091 = sadd.s32 1, %s2087
            $region66: #{tpu_custom_call.1} parent=59 // loop_footer_branch
              %2086 = sbr.rel target = $region62
            $region67: #{tpu_custom_call.1} parent=59 // loop_exit
              _
          $region60: #{tpu_custom_call.1} parent=44 // pred_fallthru
            _
          // Predicated region
          $region68: #{tpu_custom_call.1} parent=44 // pred_check
            _
          $region69: #{tpu_custom_call.1} parent=44 // pred_check_branch
            %2097 = sbr.rel target = $region71
          $region70: #{tpu_custom_call.1} parent=44 // pred_region
            _
          $region71: #{tpu_custom_call.1} parent=44 // pred_fallthru
            _
        $region45: #{tpu_custom_call.1} parent=40 // pred_fallthru
          _
        // Predicated region
        $region46: #{tpu_custom_call.1} parent=40 // pred_check
          _
        $region47: #{tpu_custom_call.1} parent=40 // pred_check_branch
          %2071 = sbr.rel target = $region49
        $region48: #{tpu_custom_call.1} parent=40 // pred_region
          %s2073 = ssub.s32 256, 1
          loop: start=0, step=1, limit=1
          $region50: #{tpu_custom_call.1} parent=48 // loop_pre_header
            _
          $region51: #{tpu_custom_call.1} parent=48 // loop_header
            %s2075 = sphi 0, %s2079
            %p2076 = scmp.ge.s32.totalorder %s2075, 1
            %s2080 = sphi [#allocation4], [#allocation4]
            %s2081 = sphi %s7, %s7
          $region52: #{tpu_custom_call.1} parent=48 // loop_header_branch
            %2078 = sbr.rel (%p2076) target = $region56
          $region53: #{tpu_custom_call.1} parent=48 // loop_body
            %v2082 = vld [vmem:[%s2080] sm:%s2073]
            %2083 = vst [vmem:[%s2081] sm:%s2073] %v2082
          $region54: #{tpu_custom_call.1} parent=48 // loop_footer
            %s2079 = sadd.s32 1, %s2075
          $region55: #{tpu_custom_call.1} parent=48 // loop_footer_branch
            %2074 = sbr.rel target = $region51
          $region56: #{tpu_custom_call.1} parent=48 // loop_exit
            _
        $region49: #{tpu_custom_call.1} parent=40 // pred_fallthru
          _
      $region41: #{tpu_custom_call.1} parent=36 // pred_fallthru
        _
      %2098 = vnop
    $region37: #{tpu_custom_call.1} parent=1 // pred_fallthru
      _
    // Predicated region
    $region72: #{tpu_custom_call.1} parent=1 // pred_check
      _
    $region73: #{tpu_custom_call.1} parent=1 // pred_check_branch
      %2100 = sbr.rel (0) target = $region75
    $region74: #{tpu_custom_call.1} parent=1 // pred_region
      _
    $region75: #{tpu_custom_call.1} parent=1 // pred_fallthru
      _
    %2101 = vsyncpa [#allocation3], 1

</llo_original>
